<compile_context>
chip_gen: v7x
topology: tpu7x:2x2x1
jax: 0.10.0
libtpu: 0.0.40
codegen_flags: <defaults>
</compile_context>

<pallas_src>
import jax
import jax.numpy as jnp
from jax.experimental import pallas as pl
from jax.experimental.pallas import tpu as pltpu


def _round_up(x, m):
    return ((x + m - 1) // m) * m


def lstm_fc_kernel(tokens_ref, emb_ref, wih_ref, whh_ref, b_ref, wfc_ref,
                   bfc_ref, out_ref, x_scratch):
    """Fused embedding-gather + LSTM recurrence + FC head.

    tokens_ref : SMEM [B, T] int32    (scalar-prefetch)
    emb_ref    : VMEM [V, E_pad]      embedding table (zero-padded columns)
    wih_ref    : VMEM [E_pad, 4H]     input->gates weights (pre-transposed)
    whh_ref    : VMEM [H, 4H]         hidden->gates weights (pre-transposed)
    b_ref      : VMEM [1, 4H]         fused LSTM bias (b_ih + b_hh)
    wfc_ref    : VMEM [H, C_pad]      FC weights (pre-transposed, zero-padded)
    bfc_ref    : VMEM [1, C_pad]      FC bias (zero-padded)
    out_ref    : VMEM [B_pad, C_pad]  padded logits (sliced in the wrapper)
    x_scratch  : VMEM [T*B_pad, E_pad] gathered embeddings, time-major
    """
    B, T = tokens_ref.shape
    H = whh_ref.shape[0]
    B_pad = out_ref.shape[0]

    # ---- 1) In-kernel embedding gather (token ids read from SMEM). ----------
    x_scratch[...] = jnp.zeros_like(x_scratch)
    for t in range(T):
        for b in range(B):
            tok = tokens_ref[b, t]
            x_scratch[pl.ds(t * B_pad + b, 1), :] = emb_ref[pl.ds(tok, 1), :]

    # ---- 2) Hoisted input projection: one big MXU matmul for all steps. -----
    xw = (
        jnp.dot(x_scratch[...], wih_ref[...], preferred_element_type=jnp.float32)
        + b_ref[...]
    )  # [T*B_pad, 4H]

    # ---- 3) Statically-unrolled recurrence: only h @ Whh per step. ----------
    whh = whh_ref[...]
    h = jnp.zeros((B_pad, H), jnp.float32)
    c = jnp.zeros((B_pad, H), jnp.float32)
    for t in range(T):
        gates = xw[t * B_pad:(t + 1) * B_pad, :] + jnp.dot(
            h, whh, preferred_element_type=jnp.float32)  # [B_pad, 4H]
        # PyTorch gate order: i, f, g, o.  H is a multiple of 128, so these
        # slices are lane-group aligned (no XLU lane rotation).
        i_g = jax.nn.sigmoid(gates[:, 0 * H:1 * H])
        f_g = jax.nn.sigmoid(gates[:, 1 * H:2 * H])
        g_g = jnp.tanh(gates[:, 2 * H:3 * H])
        o_g = jax.nn.sigmoid(gates[:, 3 * H:4 * H])
        c = f_g * c + i_g * g_g
        h = o_g * jnp.tanh(c)

    # ---- 4) FC head, written as a lane-dense padded slab. -------------------
    out_ref[...] = (
        jnp.dot(h, wfc_ref[...], preferred_element_type=jnp.float32)
        + bfc_ref[...]
    )


def preprocess_params(params):
    """One-time weight prep (hoisted out of the forward): transpose to
    right-multiply layout, fuse the two LSTM biases, zero-pad embedding / class
    dims to lane width (128)."""
    emb = params["embedding"].astype(jnp.float32)            # [V, E]
    w_ih = params["w_ih"].astype(jnp.float32)                # [4H, E]
    w_hh = params["w_hh"].astype(jnp.float32)                # [4H, H]
    b_lstm = (params["b_ih"] + params["b_hh"]).astype(jnp.float32)  # [4H]
    w_fc = params["w_fc"].astype(jnp.float32)                # [C, H]
    b_fc = params["b_fc"].astype(jnp.float32)                # [C]

    V, E = emb.shape
    H = w_hh.shape[1]
    C = w_fc.shape[0]
    E_pad = _round_up(E, 128)
    C_pad = _round_up(C, 128)

    emb_p = jnp.zeros((V, E_pad), jnp.float32).at[:, :E].set(emb)
    wih_p = jnp.zeros((E_pad, 4 * H), jnp.float32).at[:E, :].set(w_ih.T)
    whh_p = w_hh.T                                           # [H, 4H]
    b_p = b_lstm[None, :]                                    # [1, 4H]
    wfc_p = jnp.zeros((H, C_pad), jnp.float32).at[:, :C].set(w_fc.T)
    bfc_p = jnp.zeros((1, C_pad), jnp.float32).at[0, :C].set(b_fc)

    return {
        "emb": emb_p, "wih": wih_p, "whh": whh_p, "b": b_p,
        "wfc": wfc_p, "bfc": bfc_p, "num_classes": C,
    }


def look_classifier_forward(x_tokens, prep):
    """x_tokens: int32 [B, T] token ids.  Returns logits [B, num_classes]."""
    B, T = x_tokens.shape
    C = prep["num_classes"]
    E_pad = prep["emb"].shape[1]
    C_pad = prep["wfc"].shape[1]
    B_pad = _round_up(B, 8)          # f32 sublane count

    vmem_specs = [
        pl.BlockSpec(memory_space=pltpu.MemorySpace.VMEM) for _ in range(6)
    ]

    out_padded = pl.pallas_call(
        lstm_fc_kernel,
        out_shape=jax.ShapeDtypeStruct((B_pad, C_pad), jnp.float32),
        grid_spec=pltpu.PrefetchScalarGridSpec(
            num_scalar_prefetch=1,
            grid=(1,),
            in_specs=vmem_specs,
            out_specs=pl.BlockSpec(memory_space=pltpu.MemorySpace.VMEM),
            scratch_shapes=[pltpu.VMEM((T * B_pad, E_pad), jnp.float32)],
        ),
        compiler_params=pltpu.CompilerParams(
            dimension_semantics=("arbitrary",)),
    )(x_tokens.astype(jnp.int32), prep["emb"], prep["wih"], prep["whh"],
      prep["b"], prep["wfc"], prep["bfc"])

    return out_padded[:B, :C]


def look_classifier_reference(x_tokens, params):
    """Pure-JAX reference matching the PyTorch module semantics."""
    emb = jnp.take(params["embedding"], x_tokens, axis=0)    # [B, T, E]
    B, T, _ = emb.shape
    H = params["w_hh"].shape[1]
    wih_t = params["w_ih"].T
    whh_t = params["w_hh"].T
    b = params["b_ih"] + params["b_hh"]
    h = jnp.zeros((B, H), jnp.float32)
    c = jnp.zeros((B, H), jnp.float32)
    for t in range(T):
        gates = emb[:, t, :] @ wih_t + h @ whh_t + b
        i_g = jax.nn.sigmoid(gates[:, 0 * H:1 * H])
        f_g = jax.nn.sigmoid(gates[:, 1 * H:2 * H])
        g_g = jnp.tanh(gates[:, 2 * H:3 * H])
        o_g = jax.nn.sigmoid(gates[:, 3 * H:4 * H])
        c = f_g * c + i_g * g_g
        h = o_g * jnp.tanh(c)
    return h @ params["w_fc"].T + params["b_fc"]


def init_params(key, vocab_size, embedding_dim, hidden_dim, num_classes):
    ks = jax.random.split(key, 7)
    scale = 0.1
    return {
        "embedding": scale * jax.random.normal(ks[0], (vocab_size, embedding_dim), jnp.float32),
        "w_ih": scale * jax.random.normal(ks[1], (4 * hidden_dim, embedding_dim), jnp.float32),
        "w_hh": scale * jax.random.normal(ks[2], (4 * hidden_dim, hidden_dim), jnp.float32),
        "b_ih": scale * jax.random.normal(ks[3], (4 * hidden_dim,), jnp.float32),
        "b_hh": scale * jax.random.normal(ks[4], (4 * hidden_dim,), jnp.float32),
        "w_fc": scale * jax.random.normal(ks[5], (num_classes, hidden_dim), jnp.float32),
        "b_fc": scale * jax.random.normal(ks[6], (num_classes,), jnp.float32),
    }


if __name__ == "__main__":
    # Small shapes consistent with the module: embedding_dim=100, hidden_dim=128
    # (per the spec), small vocab / class count / batch / sequence.
    B, T = 2, 8
    VOCAB, E, H, C = 50, 100, 128, 8

    key = jax.random.PRNGKey(0)
    k_param, k_tok = jax.random.split(key)
    params = init_params(k_param, VOCAB, E, H, C)
    prep = preprocess_params(params)   # one-time weight prep (hoisted)

    x_tokens = jax.random.randint(k_tok, (B, T), minval=0, maxval=VOCAB,
                                  dtype=jnp.int32)

    logits = look_classifier_forward(x_tokens, prep)
    logits = jax.block_until_ready(logits)
    assert logits.shape == (B, C) and logits.dtype == jnp.float32

    ref = look_classifier_reference(x_tokens, params)
    max_err = float(jnp.max(jnp.abs(logits - ref)))
    assert max_err < 2e-2, f"mismatch vs reference: {max_err}"

    print("KERNEL_OK")
</pallas_src>

<mosaic_0001>
module attributes {stable_mosaic.version = 11 : i64} {
  func.func @lstm_fc_kernel(%arg0: i32, %arg1: memref<2x8xi32, #tpu.memory_space<smem>>, %arg2: memref<50x128xf32, #tpu.memory_space<vmem>>, %arg3: memref<128x512xf32, #tpu.memory_space<vmem>>, %arg4: memref<128x512xf32, #tpu.memory_space<vmem>>, %arg5: memref<1x512xf32, #tpu.memory_space<vmem>>, %arg6: memref<128x128xf32, #tpu.memory_space<vmem>>, %arg7: memref<1x128xf32, #tpu.memory_space<vmem>>, %arg8: memref<8x128xf32, #tpu.memory_space<vmem>>, %arg9: memref<64x128xf32, #tpu.memory_space<vmem>>) attributes {dimension_semantics = [#tpu.dimension_semantics<arbitrary>], iteration_bounds = array<i64: 1>, scalar_prefetch = 1 : i64, scratch_operands = 1 : i64, tpu.core_type = #tpu.core_type<tc>, window_params = [{pipeline_mode = #tpu.pipeline_mode<synchronous>, transform_indices = @transform_0, window_bounds = array<i64: 50, 128>}, {pipeline_mode = #tpu.pipeline_mode<synchronous>, transform_indices = @transform_1, window_bounds = array<i64: 128, 512>}, {pipeline_mode = #tpu.pipeline_mode<synchronous>, transform_indices = @transform_2, window_bounds = array<i64: 128, 512>}, {pipeline_mode = #tpu.pipeline_mode<synchronous>, transform_indices = @transform_3, window_bounds = array<i64: 1, 512>}, {pipeline_mode = #tpu.pipeline_mode<synchronous>, transform_indices = @transform_4, window_bounds = array<i64: 128, 128>}, {pipeline_mode = #tpu.pipeline_mode<synchronous>, transform_indices = @transform_5, window_bounds = array<i64: 1, 128>}, {pipeline_mode = #tpu.pipeline_mode<synchronous>, transform_indices = @transform_6, window_bounds = array<i64: 8, 128>}]} {
    %cst = arith.constant 0.000000e+00 : f32
    %0 = vector.broadcast %cst : f32 to vector<64x128xf32>
    %c0 = arith.constant 0 : index
    %c0_0 = arith.constant 0 : index
    %1 = vector.load %arg9[%c0, %c0_0] : memref<64x128xf32, #tpu.memory_space<vmem>>, vector<64x128xf32>
    tpu.vector_store %arg9[%c0, %c0_0], %0 {strides = array<i32>} : memref<64x128xf32, #tpu.memory_space<vmem>>, vector<64x128xf32>,
    %c0_1 = arith.constant 0 : index
    %c0_2 = arith.constant 0 : index
    %2 = memref.load %arg1[%c0_1, %c0_2] : memref<2x8xi32, #tpu.memory_space<smem>>
    %3 = arith.index_cast %2 : i32 to index
    %c0_3 = arith.constant 0 : index
    %4 = vector.load %arg2[%3, %c0_3] : memref<50x128xf32, #tpu.memory_space<vmem>>, vector<1x128xf32>
    %c0_4 = arith.constant 0 : index
    %c0_5 = arith.constant 0 : index
    %5 = vector.load %arg9[%c0_4, %c0_5] : memref<64x128xf32, #tpu.memory_space<vmem>>, vector<1x128xf32>
    tpu.vector_store %arg9[%c0_4, %c0_5], %4 {strides = array<i32>} : memref<64x128xf32, #tpu.memory_space<vmem>>, vector<1x128xf32>,
    %c1 = arith.constant 1 : index
    %c0_6 = arith.constant 0 : index
    %6 = memref.load %arg1[%c1, %c0_6] : memref<2x8xi32, #tpu.memory_space<smem>>
    %7 = arith.index_cast %6 : i32 to index
    %c0_7 = arith.constant 0 : index
    %8 = vector.load %arg2[%7, %c0_7] : memref<50x128xf32, #tpu.memory_space<vmem>>, vector<1x128xf32>
    %c1_8 = arith.constant 1 : index
    %c0_9 = arith.constant 0 : index
    %9 = vector.load %arg9[%c1_8, %c0_9] : memref<64x128xf32, #tpu.memory_space<vmem>>, vector<1x128xf32>
    tpu.vector_store %arg9[%c1_8, %c0_9], %8 {strides = array<i32>} : memref<64x128xf32, #tpu.memory_space<vmem>>, vector<1x128xf32>,
    %c0_10 = arith.constant 0 : index
    %c1_11 = arith.constant 1 : index
    %10 = memref.load %arg1[%c0_10, %c1_11] : memref<2x8xi32, #tpu.memory_space<smem>>
    %11 = arith.index_cast %10 : i32 to index
    %c0_12 = arith.constant 0 : index
    %12 = vector.load %arg2[%11, %c0_12] : memref<50x128xf32, #tpu.memory_space<vmem>>, vector<1x128xf32>
    %c8 = arith.constant 8 : index
    %c0_13 = arith.constant 0 : index
    %13 = vector.load %arg9[%c8, %c0_13] : memref<64x128xf32, #tpu.memory_space<vmem>>, vector<1x128xf32>
    tpu.vector_store %arg9[%c8, %c0_13], %12 {strides = array<i32>} : memref<64x128xf32, #tpu.memory_space<vmem>>, vector<1x128xf32>,
    %c1_14 = arith.constant 1 : index
    %c1_15 = arith.constant 1 : index
    %14 = memref.load %arg1[%c1_14, %c1_15] : memref<2x8xi32, #tpu.memory_space<smem>>
    %15 = arith.index_cast %14 : i32 to index
    %c0_16 = arith.constant 0 : index
    %16 = vector.load %arg2[%15, %c0_16] : memref<50x128xf32, #tpu.memory_space<vmem>>, vector<1x128xf32>
    %c9 = arith.constant 9 : index
    %c0_17 = arith.constant 0 : index
    %17 = vector.load %arg9[%c9, %c0_17] : memref<64x128xf32, #tpu.memory_space<vmem>>, vector<1x128xf32>
    tpu.vector_store %arg9[%c9, %c0_17], %16 {strides = array<i32>} : memref<64x128xf32, #tpu.memory_space<vmem>>, vector<1x128xf32>,
    %c0_18 = arith.constant 0 : index
    %c2 = arith.constant 2 : index
    %18 = memref.load %arg1[%c0_18, %c2] : memref<2x8xi32, #tpu.memory_space<smem>>
    %19 = arith.index_cast %18 : i32 to index
    %c0_19 = arith.constant 0 : index
    %20 = vector.load %arg2[%19, %c0_19] : memref<50x128xf32, #tpu.memory_space<vmem>>, vector<1x128xf32>
    %c16 = arith.constant 16 : index
    %c0_20 = arith.constant 0 : index
    %21 = vector.load %arg9[%c16, %c0_20] : memref<64x128xf32, #tpu.memory_space<vmem>>, vector<1x128xf32>
    tpu.vector_store %arg9[%c16, %c0_20], %20 {strides = array<i32>} : memref<64x128xf32, #tpu.memory_space<vmem>>, vector<1x128xf32>,
    %c1_21 = arith.constant 1 : index
    %c2_22 = arith.constant 2 : index
    %22 = memref.load %arg1[%c1_21, %c2_22] : memref<2x8xi32, #tpu.memory_space<smem>>
    %23 = arith.index_cast %22 : i32 to index
    %c0_23 = arith.constant 0 : index
    %24 = vector.load %arg2[%23, %c0_23] : memref<50x128xf32, #tpu.memory_space<vmem>>, vector<1x128xf32>
    %c17 = arith.constant 17 : index
    %c0_24 = arith.constant 0 : index
    %25 = vector.load %arg9[%c17, %c0_24] : memref<64x128xf32, #tpu.memory_space<vmem>>, vector<1x128xf32>
    tpu.vector_store %arg9[%c17, %c0_24], %24 {strides = array<i32>} : memref<64x128xf32, #tpu.memory_space<vmem>>, vector<1x128xf32>,
    %c0_25 = arith.constant 0 : index
    %c3 = arith.constant 3 : index
    %26 = memref.load %arg1[%c0_25, %c3] : memref<2x8xi32, #tpu.memory_space<smem>>
    %27 = arith.index_cast %26 : i32 to index
    %c0_26 = arith.constant 0 : index
    %28 = vector.load %arg2[%27, %c0_26] : memref<50x128xf32, #tpu.memory_space<vmem>>, vector<1x128xf32>
    %c24 = arith.constant 24 : index
    %c0_27 = arith.constant 0 : index
    %29 = vector.load %arg9[%c24, %c0_27] : memref<64x128xf32, #tpu.memory_space<vmem>>, vector<1x128xf32>
    tpu.vector_store %arg9[%c24, %c0_27], %28 {strides = array<i32>} : memref<64x128xf32, #tpu.memory_space<vmem>>, vector<1x128xf32>,
    %c1_28 = arith.constant 1 : index
    %c3_29 = arith.constant 3 : index
    %30 = memref.load %arg1[%c1_28, %c3_29] : memref<2x8xi32, #tpu.memory_space<smem>>
    %31 = arith.index_cast %30 : i32 to index
    %c0_30 = arith.constant 0 : index
    %32 = vector.load %arg2[%31, %c0_30] : memref<50x128xf32, #tpu.memory_space<vmem>>, vector<1x128xf32>
    %c25 = arith.constant 25 : index
    %c0_31 = arith.constant 0 : index
    %33 = vector.load %arg9[%c25, %c0_31] : memref<64x128xf32, #tpu.memory_space<vmem>>, vector<1x128xf32>
    tpu.vector_store %arg9[%c25, %c0_31], %32 {strides = array<i32>} : memref<64x128xf32, #tpu.memory_space<vmem>>, vector<1x128xf32>,
    %c0_32 = arith.constant 0 : index
    %c4 = arith.constant 4 : index
    %34 = memref.load %arg1[%c0_32, %c4] : memref<2x8xi32, #tpu.memory_space<smem>>
    %35 = arith.index_cast %34 : i32 to index
    %c0_33 = arith.constant 0 : index
    %36 = vector.load %arg2[%35, %c0_33] : memref<50x128xf32, #tpu.memory_space<vmem>>, vector<1x128xf32>
    %c32 = arith.constant 32 : index
    %c0_34 = arith.constant 0 : index
    %37 = vector.load %arg9[%c32, %c0_34] : memref<64x128xf32, #tpu.memory_space<vmem>>, vector<1x128xf32>
    tpu.vector_store %arg9[%c32, %c0_34], %36 {strides = array<i32>} : memref<64x128xf32, #tpu.memory_space<vmem>>, vector<1x128xf32>,
    %c1_35 = arith.constant 1 : index
    %c4_36 = arith.constant 4 : index
    %38 = memref.load %arg1[%c1_35, %c4_36] : memref<2x8xi32, #tpu.memory_space<smem>>
    %39 = arith.index_cast %38 : i32 to index
    %c0_37 = arith.constant 0 : index
    %40 = vector.load %arg2[%39, %c0_37] : memref<50x128xf32, #tpu.memory_space<vmem>>, vector<1x128xf32>
    %c33 = arith.constant 33 : index
    %c0_38 = arith.constant 0 : index
    %41 = vector.load %arg9[%c33, %c0_38] : memref<64x128xf32, #tpu.memory_space<vmem>>, vector<1x128xf32>
    tpu.vector_store %arg9[%c33, %c0_38], %40 {strides = array<i32>} : memref<64x128xf32, #tpu.memory_space<vmem>>, vector<1x128xf32>,
    %c0_39 = arith.constant 0 : index
    %c5 = arith.constant 5 : index
    %42 = memref.load %arg1[%c0_39, %c5] : memref<2x8xi32, #tpu.memory_space<smem>>
    %43 = arith.index_cast %42 : i32 to index
    %c0_40 = arith.constant 0 : index
    %44 = vector.load %arg2[%43, %c0_40] : memref<50x128xf32, #tpu.memory_space<vmem>>, vector<1x128xf32>
    %c40 = arith.constant 40 : index
    %c0_41 = arith.constant 0 : index
    %45 = vector.load %arg9[%c40, %c0_41] : memref<64x128xf32, #tpu.memory_space<vmem>>, vector<1x128xf32>
    tpu.vector_store %arg9[%c40, %c0_41], %44 {strides = array<i32>} : memref<64x128xf32, #tpu.memory_space<vmem>>, vector<1x128xf32>,
    %c1_42 = arith.constant 1 : index
    %c5_43 = arith.constant 5 : index
    %46 = memref.load %arg1[%c1_42, %c5_43] : memref<2x8xi32, #tpu.memory_space<smem>>
    %47 = arith.index_cast %46 : i32 to index
    %c0_44 = arith.constant 0 : index
    %48 = vector.load %arg2[%47, %c0_44] : memref<50x128xf32, #tpu.memory_space<vmem>>, vector<1x128xf32>
    %c41 = arith.constant 41 : index
    %c0_45 = arith.constant 0 : index
    %49 = vector.load %arg9[%c41, %c0_45] : memref<64x128xf32, #tpu.memory_space<vmem>>, vector<1x128xf32>
    tpu.vector_store %arg9[%c41, %c0_45], %48 {strides = array<i32>} : memref<64x128xf32, #tpu.memory_space<vmem>>, vector<1x128xf32>,
    %c0_46 = arith.constant 0 : index
    %c6 = arith.constant 6 : index
    %50 = memref.load %arg1[%c0_46, %c6] : memref<2x8xi32, #tpu.memory_space<smem>>
    %51 = arith.index_cast %50 : i32 to index
    %c0_47 = arith.constant 0 : index
    %52 = vector.load %arg2[%51, %c0_47] : memref<50x128xf32, #tpu.memory_space<vmem>>, vector<1x128xf32>
    %c48 = arith.constant 48 : index
    %c0_48 = arith.constant 0 : index
    %53 = vector.load %arg9[%c48, %c0_48] : memref<64x128xf32, #tpu.memory_space<vmem>>, vector<1x128xf32>
    tpu.vector_store %arg9[%c48, %c0_48], %52 {strides = array<i32>} : memref<64x128xf32, #tpu.memory_space<vmem>>, vector<1x128xf32>,
    %c1_49 = arith.constant 1 : index
    %c6_50 = arith.constant 6 : index
    %54 = memref.load %arg1[%c1_49, %c6_50] : memref<2x8xi32, #tpu.memory_space<smem>>
    %55 = arith.index_cast %54 : i32 to index
    %c0_51 = arith.constant 0 : index
    %56 = vector.load %arg2[%55, %c0_51] : memref<50x128xf32, #tpu.memory_space<vmem>>, vector<1x128xf32>
    %c49 = arith.constant 49 : index
    %c0_52 = arith.constant 0 : index
    %57 = vector.load %arg9[%c49, %c0_52] : memref<64x128xf32, #tpu.memory_space<vmem>>, vector<1x128xf32>
    tpu.vector_store %arg9[%c49, %c0_52], %56 {strides = array<i32>} : memref<64x128xf32, #tpu.memory_space<vmem>>, vector<1x128xf32>,
    %c0_53 = arith.constant 0 : index
    %c7 = arith.constant 7 : index
    %58 = memref.load %arg1[%c0_53, %c7] : memref<2x8xi32, #tpu.memory_space<smem>>
    %59 = arith.index_cast %58 : i32 to index
    %c0_54 = arith.constant 0 : index
    %60 = vector.load %arg2[%59, %c0_54] : memref<50x128xf32, #tpu.memory_space<vmem>>, vector<1x128xf32>
    %c56 = arith.constant 56 : index
    %c0_55 = arith.constant 0 : index
    %61 = vector.load %arg9[%c56, %c0_55] : memref<64x128xf32, #tpu.memory_space<vmem>>, vector<1x128xf32>
    tpu.vector_store %arg9[%c56, %c0_55], %60 {strides = array<i32>} : memref<64x128xf32, #tpu.memory_space<vmem>>, vector<1x128xf32>,
    %c1_56 = arith.constant 1 : index
    %c7_57 = arith.constant 7 : index
    %62 = memref.load %arg1[%c1_56, %c7_57] : memref<2x8xi32, #tpu.memory_space<smem>>
    %63 = arith.index_cast %62 : i32 to index
    %c0_58 = arith.constant 0 : index
    %64 = vector.load %arg2[%63, %c0_58] : memref<50x128xf32, #tpu.memory_space<vmem>>, vector<1x128xf32>
    %c57 = arith.constant 57 : index
    %c0_59 = arith.constant 0 : index
    %65 = vector.load %arg9[%c57, %c0_59] : memref<64x128xf32, #tpu.memory_space<vmem>>, vector<1x128xf32>
    tpu.vector_store %arg9[%c57, %c0_59], %64 {strides = array<i32>} : memref<64x128xf32, #tpu.memory_space<vmem>>, vector<1x128xf32>,
    %c0_60 = arith.constant 0 : index
    %c0_61 = arith.constant 0 : index
    %66 = vector.load %arg9[%c0_60, %c0_61] : memref<64x128xf32, #tpu.memory_space<vmem>>, vector<64x128xf32>
    %c0_62 = arith.constant 0 : index
    %c0_63 = arith.constant 0 : index
    %67 = vector.load %arg3[%c0_62, %c0_63] : memref<128x512xf32, #tpu.memory_space<vmem>>, vector<128x512xf32>
    %cst_64 = arith.constant dense<0.000000e+00> : vector<64x512xf32>
    %68 = tpu.matmul %66, %67, %cst_64 {dimension_numbers = #tpu.dot_dimension_numbers<[1], [0], [0], [1], [0, 0, 1, 1], [], []>} : vector<64x128xf32>, vector<128x512xf32>, vector<64x512xf32> -> vector<64x512xf32>
    %c0_65 = arith.constant 0 : index
    %c0_66 = arith.constant 0 : index
    %69 = vector.load %arg5[%c0_65, %c0_66] : memref<1x512xf32, #tpu.memory_space<vmem>>, vector<1x512xf32>
    %70 = vector.broadcast %69 : vector<1x512xf32> to vector<64x512xf32>
    %71 = arith.addf %68, %70 : vector<64x512xf32>
    %c0_67 = arith.constant 0 : index
    %c0_68 = arith.constant 0 : index
    %72 = vector.load %arg4[%c0_67, %c0_68] : memref<128x512xf32, #tpu.memory_space<vmem>>, vector<128x512xf32>
    %cst_69 = arith.constant 0.000000e+00 : f32
    %73 = vector.broadcast %cst_69 : f32 to vector<8x128xf32>
    %cst_70 = arith.constant 0.000000e+00 : f32
    %74 = vector.broadcast %cst_70 : f32 to vector<8x128xf32>
    %75 = vector.extract_strided_slice %71 {offsets = [0, 0], sizes = [8, 512], strides = [1, 1]} : vector<64x512xf32> to vector<8x512xf32>
    %cst_71 = arith.constant dense<0.000000e+00> : vector<8x512xf32>
    %76 = tpu.matmul %73, %72, %cst_71 {dimension_numbers = #tpu.dot_dimension_numbers<[1], [0], [0], [1], [0, 0, 1, 1], [], []>} : vector<8x128xf32>, vector<128x512xf32>, vector<8x512xf32> -> vector<8x512xf32>
    %77 = arith.addf %75, %76 : vector<8x512xf32>
    %78 = vector.extract_strided_slice %77 {offsets = [0, 0], sizes = [8, 128], strides = [1, 1]} : vector<8x512xf32> to vector<8x128xf32>
    %79 = arith.negf %78 : vector<8x128xf32>
    %80 = math.exp %79 : vector<8x128xf32>
    %cst_72 = arith.constant 1.000000e+00 : f32
    %81 = vector.broadcast %cst_72 : f32 to vector<8x128xf32>
    %82 = arith.addf %81, %80 : vector<8x128xf32>
    %83 = arith.divf %81, %82 : vector<8x128xf32>
    %84 = vector.extract_strided_slice %77 {offsets = [0, 128], sizes = [8, 128], strides = [1, 1]} : vector<8x512xf32> to vector<8x128xf32>
    %85 = arith.negf %84 : vector<8x128xf32>
    %86 = math.exp %85 : vector<8x128xf32>
    %cst_73 = arith.constant 1.000000e+00 : f32
    %87 = vector.broadcast %cst_73 : f32 to vector<8x128xf32>
    %88 = arith.addf %87, %86 : vector<8x128xf32>
    %89 = arith.divf %87, %88 : vector<8x128xf32>
    %90 = vector.extract_strided_slice %77 {offsets = [0, 256], sizes = [8, 128], strides = [1, 1]} : vector<8x512xf32> to vector<8x128xf32>
    %91 = math.tanh %90 : vector<8x128xf32>
    %92 = vector.extract_strided_slice %77 {offsets = [0, 384], sizes = [8, 128], strides = [1, 1]} : vector<8x512xf32> to vector<8x128xf32>
    %93 = arith.negf %92 : vector<8x128xf32>
    %94 = math.exp %93 : vector<8x128xf32>
    %cst_74 = arith.constant 1.000000e+00 : f32
    %95 = vector.broadcast %cst_74 : f32 to vector<8x128xf32>
    %96 = arith.addf %95, %94 : vector<8x128xf32>
    %97 = arith.divf %95, %96 : vector<8x128xf32>
    %98 = arith.mulf %89, %74 : vector<8x128xf32>
    %99 = arith.mulf %83, %91 : vector<8x128xf32>
    %100 = arith.addf %98, %99 : vector<8x128xf32>
    %101 = math.tanh %100 : vector<8x128xf32>
    %102 = arith.mulf %97, %101 : vector<8x128xf32>
    %103 = vector.extract_strided_slice %71 {offsets = [8, 0], sizes = [8, 512], strides = [1, 1]} : vector<64x512xf32> to vector<8x512xf32>
    %cst_75 = arith.constant dense<0.000000e+00> : vector<8x512xf32>
    %104 = tpu.matmul %102, %72, %cst_75 {dimension_numbers = #tpu.dot_dimension_numbers<[1], [0], [0], [1], [0, 0, 1, 1], [], []>} : vector<8x128xf32>, vector<128x512xf32>, vector<8x512xf32> -> vector<8x512xf32>
    %105 = arith.addf %103, %104 : vector<8x512xf32>
    %106 = vector.extract_strided_slice %105 {offsets = [0, 0], sizes = [8, 128], strides = [1, 1]} : vector<8x512xf32> to vector<8x128xf32>
    %107 = arith.negf %106 : vector<8x128xf32>
    %108 = math.exp %107 : vector<8x128xf32>
    %cst_76 = arith.constant 1.000000e+00 : f32
    %109 = vector.broadcast %cst_76 : f32 to vector<8x128xf32>
    %110 = arith.addf %109, %108 : vector<8x128xf32>
    %111 = arith.divf %109, %110 : vector<8x128xf32>
    %112 = vector.extract_strided_slice %105 {offsets = [0, 128], sizes = [8, 128], strides = [1, 1]} : vector<8x512xf32> to vector<8x128xf32>
    %113 = arith.negf %112 : vector<8x128xf32>
    %114 = math.exp %113 : vector<8x128xf32>
    %cst_77 = arith.constant 1.000000e+00 : f32
    %115 = vector.broadcast %cst_77 : f32 to vector<8x128xf32>
    %116 = arith.addf %115, %114 : vector<8x128xf32>
    %117 = arith.divf %115, %116 : vector<8x128xf32>
    %118 = vector.extract_strided_slice %105 {offsets = [0, 256], sizes = [8, 128], strides = [1, 1]} : vector<8x512xf32> to vector<8x128xf32>
    %119 = math.tanh %118 : vector<8x128xf32>
    %120 = vector.extract_strided_slice %105 {offsets = [0, 384], sizes = [8, 128], strides = [1, 1]} : vector<8x512xf32> to vector<8x128xf32>
    %121 = arith.negf %120 : vector<8x128xf32>
    %122 = math.exp %121 : vector<8x128xf32>
    %cst_78 = arith.constant 1.000000e+00 : f32
    %123 = vector.broadcast %cst_78 : f32 to vector<8x128xf32>
    %124 = arith.addf %123, %122 : vector<8x128xf32>
    %125 = arith.divf %123, %124 : vector<8x128xf32>
    %126 = arith.mulf %117, %100 : vector<8x128xf32>
    %127 = arith.mulf %111, %119 : vector<8x128xf32>
    %128 = arith.addf %126, %127 : vector<8x128xf32>
    %129 = math.tanh %128 : vector<8x128xf32>
    %130 = arith.mulf %125, %129 : vector<8x128xf32>
    %131 = vector.extract_strided_slice %71 {offsets = [16, 0], sizes = [8, 512], strides = [1, 1]} : vector<64x512xf32> to vector<8x512xf32>
    %cst_79 = arith.constant dense<0.000000e+00> : vector<8x512xf32>
    %132 = tpu.matmul %130, %72, %cst_79 {dimension_numbers = #tpu.dot_dimension_numbers<[1], [0], [0], [1], [0, 0, 1, 1], [], []>} : vector<8x128xf32>, vector<128x512xf32>, vector<8x512xf32> -> vector<8x512xf32>
    %133 = arith.addf %131, %132 : vector<8x512xf32>
    %134 = vector.extract_strided_slice %133 {offsets = [0, 0], sizes = [8, 128], strides = [1, 1]} : vector<8x512xf32> to vector<8x128xf32>
    %135 = arith.negf %134 : vector<8x128xf32>
    %136 = math.exp %135 : vector<8x128xf32>
    %cst_80 = arith.constant 1.000000e+00 : f32
    %137 = vector.broadcast %cst_80 : f32 to vector<8x128xf32>
    %138 = arith.addf %137, %136 : vector<8x128xf32>
    %139 = arith.divf %137, %138 : vector<8x128xf32>
    %140 = vector.extract_strided_slice %133 {offsets = [0, 128], sizes = [8, 128], strides = [1, 1]} : vector<8x512xf32> to vector<8x128xf32>
    %141 = arith.negf %140 : vector<8x128xf32>
    %142 = math.exp %141 : vector<8x128xf32>
    %cst_81 = arith.constant 1.000000e+00 : f32
    %143 = vector.broadcast %cst_81 : f32 to vector<8x128xf32>
    %144 = arith.addf %143, %142 : vector<8x128xf32>
    %145 = arith.divf %143, %144 : vector<8x128xf32>
    %146 = vector.extract_strided_slice %133 {offsets = [0, 256], sizes = [8, 128], strides = [1, 1]} : vector<8x512xf32> to vector<8x128xf32>
    %147 = math.tanh %146 : vector<8x128xf32>
    %148 = vector.extract_strided_slice %133 {offsets = [0, 384], sizes = [8, 128], strides = [1, 1]} : vector<8x512xf32> to vector<8x128xf32>
    %149 = arith.negf %148 : vector<8x128xf32>
    %150 = math.exp %149 : vector<8x128xf32>
    %cst_82 = arith.constant 1.000000e+00 : f32
    %151 = vector.broadcast %cst_82 : f32 to vector<8x128xf32>
    %152 = arith.addf %151, %150 : vector<8x128xf32>
    %153 = arith.divf %151, %152 : vector<8x128xf32>
    %154 = arith.mulf %145, %128 : vector<8x128xf32>
    %155 = arith.mulf %139, %147 : vector<8x128xf32>
    %156 = arith.addf %154, %155 : vector<8x128xf32>
    %157 = math.tanh %156 : vector<8x128xf32>
    %158 = arith.mulf %153, %157 : vector<8x128xf32>
    %159 = vector.extract_strided_slice %71 {offsets = [24, 0], sizes = [8, 512], strides = [1, 1]} : vector<64x512xf32> to vector<8x512xf32>
    %cst_83 = arith.constant dense<0.000000e+00> : vector<8x512xf32>
    %160 = tpu.matmul %158, %72, %cst_83 {dimension_numbers = #tpu.dot_dimension_numbers<[1], [0], [0], [1], [0, 0, 1, 1], [], []>} : vector<8x128xf32>, vector<128x512xf32>, vector<8x512xf32> -> vector<8x512xf32>
    %161 = arith.addf %159, %160 : vector<8x512xf32>
    %162 = vector.extract_strided_slice %161 {offsets = [0, 0], sizes = [8, 128], strides = [1, 1]} : vector<8x512xf32> to vector<8x128xf32>
    %163 = arith.negf %162 : vector<8x128xf32>
    %164 = math.exp %163 : vector<8x128xf32>
    %cst_84 = arith.constant 1.000000e+00 : f32
    %165 = vector.broadcast %cst_84 : f32 to vector<8x128xf32>
    %166 = arith.addf %165, %164 : vector<8x128xf32>
    %167 = arith.divf %165, %166 : vector<8x128xf32>
    %168 = vector.extract_strided_slice %161 {offsets = [0, 128], sizes = [8, 128], strides = [1, 1]} : vector<8x512xf32> to vector<8x128xf32>
    %169 = arith.negf %168 : vector<8x128xf32>
    %170 = math.exp %169 : vector<8x128xf32>
    %cst_85 = arith.constant 1.000000e+00 : f32
    %171 = vector.broadcast %cst_85 : f32 to vector<8x128xf32>
    %172 = arith.addf %171, %170 : vector<8x128xf32>
    %173 = arith.divf %171, %172 : vector<8x128xf32>
    %174 = vector.extract_strided_slice %161 {offsets = [0, 256], sizes = [8, 128], strides = [1, 1]} : vector<8x512xf32> to vector<8x128xf32>
    %175 = math.tanh %174 : vector<8x128xf32>
    %176 = vector.extract_strided_slice %161 {offsets = [0, 384], sizes = [8, 128], strides = [1, 1]} : vector<8x512xf32> to vector<8x128xf32>
    %177 = arith.negf %176 : vector<8x128xf32>
    %178 = math.exp %177 : vector<8x128xf32>
    %cst_86 = arith.constant 1.000000e+00 : f32
    %179 = vector.broadcast %cst_86 : f32 to vector<8x128xf32>
    %180 = arith.addf %179, %178 : vector<8x128xf32>
    %181 = arith.divf %179, %180 : vector<8x128xf32>
    %182 = arith.mulf %173, %156 : vector<8x128xf32>
    %183 = arith.mulf %167, %175 : vector<8x128xf32>
    %184 = arith.addf %182, %183 : vector<8x128xf32>
    %185 = math.tanh %184 : vector<8x128xf32>
    %186 = arith.mulf %181, %185 : vector<8x128xf32>
    %187 = vector.extract_strided_slice %71 {offsets = [32, 0], sizes = [8, 512], strides = [1, 1]} : vector<64x512xf32> to vector<8x512xf32>
    %cst_87 = arith.constant dense<0.000000e+00> : vector<8x512xf32>
    %188 = tpu.matmul %186, %72, %cst_87 {dimension_numbers = #tpu.dot_dimension_numbers<[1], [0], [0], [1], [0, 0, 1, 1], [], []>} : vector<8x128xf32>, vector<128x512xf32>, vector<8x512xf32> -> vector<8x512xf32>
    %189 = arith.addf %187, %188 : vector<8x512xf32>
    %190 = vector.extract_strided_slice %189 {offsets = [0, 0], sizes = [8, 128], strides = [1, 1]} : vector<8x512xf32> to vector<8x128xf32>
    %191 = arith.negf %190 : vector<8x128xf32>
    %192 = math.exp %191 : vector<8x128xf32>
    %cst_88 = arith.constant 1.000000e+00 : f32
    %193 = vector.broadcast %cst_88 : f32 to vector<8x128xf32>
    %194 = arith.addf %193, %192 : vector<8x128xf32>
    %195 = arith.divf %193, %194 : vector<8x128xf32>
    %196 = vector.extract_strided_slice %189 {offsets = [0, 128], sizes = [8, 128], strides = [1, 1]} : vector<8x512xf32> to vector<8x128xf32>
    %197 = arith.negf %196 : vector<8x128xf32>
    %198 = math.exp %197 : vector<8x128xf32>
    %cst_89 = arith.constant 1.000000e+00 : f32
    %199 = vector.broadcast %cst_89 : f32 to vector<8x128xf32>
    %200 = arith.addf %199, %198 : vector<8x128xf32>
    %201 = arith.divf %199, %200 : vector<8x128xf32>
    %202 = vector.extract_strided_slice %189 {offsets = [0, 256], sizes = [8, 128], strides = [1, 1]} : vector<8x512xf32> to vector<8x128xf32>
    %203 = math.tanh %202 : vector<8x128xf32>
    %204 = vector.extract_strided_slice %189 {offsets = [0, 384], sizes = [8, 128], strides = [1, 1]} : vector<8x512xf32> to vector<8x128xf32>
    %205 = arith.negf %204 : vector<8x128xf32>
    %206 = math.exp %205 : vector<8x128xf32>
    %cst_90 = arith.constant 1.000000e+00 : f32
    %207 = vector.broadcast %cst_90 : f32 to vector<8x128xf32>
    %208 = arith.addf %207, %206 : vector<8x128xf32>
    %209 = arith.divf %207, %208 : vector<8x128xf32>
    %210 = arith.mulf %201, %184 : vector<8x128xf32>
    %211 = arith.mulf %195, %203 : vector<8x128xf32>
    %212 = arith.addf %210, %211 : vector<8x128xf32>
    %213 = math.tanh %212 : vector<8x128xf32>
    %214 = arith.mulf %209, %213 : vector<8x128xf32>
    %215 = vector.extract_strided_slice %71 {offsets = [40, 0], sizes = [8, 512], strides = [1, 1]} : vector<64x512xf32> to vector<8x512xf32>
    %cst_91 = arith.constant dense<0.000000e+00> : vector<8x512xf32>
    %216 = tpu.matmul %214, %72, %cst_91 {dimension_numbers = #tpu.dot_dimension_numbers<[1], [0], [0], [1], [0, 0, 1, 1], [], []>} : vector<8x128xf32>, vector<128x512xf32>, vector<8x512xf32> -> vector<8x512xf32>
    %217 = arith.addf %215, %216 : vector<8x512xf32>
    %218 = vector.extract_strided_slice %217 {offsets = [0, 0], sizes = [8, 128], strides = [1, 1]} : vector<8x512xf32> to vector<8x128xf32>
    %219 = arith.negf %218 : vector<8x128xf32>
    %220 = math.exp %219 : vector<8x128xf32>
    %cst_92 = arith.constant 1.000000e+00 : f32
    %221 = vector.broadcast %cst_92 : f32 to vector<8x128xf32>
    %222 = arith.addf %221, %220 : vector<8x128xf32>
    %223 = arith.divf %221, %222 : vector<8x128xf32>
    %224 = vector.extract_strided_slice %217 {offsets = [0, 128], sizes = [8, 128], strides = [1, 1]} : vector<8x512xf32> to vector<8x128xf32>
    %225 = arith.negf %224 : vector<8x128xf32>
    %226 = math.exp %225 : vector<8x128xf32>
    %cst_93 = arith.constant 1.000000e+00 : f32
    %227 = vector.broadcast %cst_93 : f32 to vector<8x128xf32>
    %228 = arith.addf %227, %226 : vector<8x128xf32>
    %229 = arith.divf %227, %228 : vector<8x128xf32>
    %230 = vector.extract_strided_slice %217 {offsets = [0, 256], sizes = [8, 128], strides = [1, 1]} : vector<8x512xf32> to vector<8x128xf32>
    %231 = math.tanh %230 : vector<8x128xf32>
    %232 = vector.extract_strided_slice %217 {offsets = [0, 384], sizes = [8, 128], strides = [1, 1]} : vector<8x512xf32> to vector<8x128xf32>
    %233 = arith.negf %232 : vector<8x128xf32>
    %234 = math.exp %233 : vector<8x128xf32>
    %cst_94 = arith.constant 1.000000e+00 : f32
    %235 = vector.broadcast %cst_94 : f32 to vector<8x128xf32>
    %236 = arith.addf %235, %234 : vector<8x128xf32>
    %237 = arith.divf %235, %236 : vector<8x128xf32>
    %238 = arith.mulf %229, %212 : vector<8x128xf32>
    %239 = arith.mulf %223, %231 : vector<8x128xf32>
    %240 = arith.addf %238, %239 : vector<8x128xf32>
    %241 = math.tanh %240 : vector<8x128xf32>
    %242 = arith.mulf %237, %241 : vector<8x128xf32>
    %243 = vector.extract_strided_slice %71 {offsets = [48, 0], sizes = [8, 512], strides = [1, 1]} : vector<64x512xf32> to vector<8x512xf32>
    %cst_95 = arith.constant dense<0.000000e+00> : vector<8x512xf32>
    %244 = tpu.matmul %242, %72, %cst_95 {dimension_numbers = #tpu.dot_dimension_numbers<[1], [0], [0], [1], [0, 0, 1, 1], [], []>} : vector<8x128xf32>, vector<128x512xf32>, vector<8x512xf32> -> vector<8x512xf32>
    %245 = arith.addf %243, %244 : vector<8x512xf32>
    %246 = vector.extract_strided_slice %245 {offsets = [0, 0], sizes = [8, 128], strides = [1, 1]} : vector<8x512xf32> to vector<8x128xf32>
    %247 = arith.negf %246 : vector<8x128xf32>
    %248 = math.exp %247 : vector<8x128xf32>
    %cst_96 = arith.constant 1.000000e+00 : f32
    %249 = vector.broadcast %cst_96 : f32 to vector<8x128xf32>
    %250 = arith.addf %249, %248 : vector<8x128xf32>
    %251 = arith.divf %249, %250 : vector<8x128xf32>
    %252 = vector.extract_strided_slice %245 {offsets = [0, 128], sizes = [8, 128], strides = [1, 1]} : vector<8x512xf32> to vector<8x128xf32>
    %253 = arith.negf %252 : vector<8x128xf32>
    %254 = math.exp %253 : vector<8x128xf32>
    %cst_97 = arith.constant 1.000000e+00 : f32
    %255 = vector.broadcast %cst_97 : f32 to vector<8x128xf32>
    %256 = arith.addf %255, %254 : vector<8x128xf32>
    %257 = arith.divf %255, %256 : vector<8x128xf32>
    %258 = vector.extract_strided_slice %245 {offsets = [0, 256], sizes = [8, 128], strides = [1, 1]} : vector<8x512xf32> to vector<8x128xf32>
    %259 = math.tanh %258 : vector<8x128xf32>
    %260 = vector.extract_strided_slice %245 {offsets = [0, 384], sizes = [8, 128], strides = [1, 1]} : vector<8x512xf32> to vector<8x128xf32>
    %261 = arith.negf %260 : vector<8x128xf32>
    %262 = math.exp %261 : vector<8x128xf32>
    %cst_98 = arith.constant 1.000000e+00 : f32
    %263 = vector.broadcast %cst_98 : f32 to vector<8x128xf32>
    %264 = arith.addf %263, %262 : vector<8x128xf32>
    %265 = arith.divf %263, %264 : vector<8x128xf32>
    %266 = arith.mulf %257, %240 : vector<8x128xf32>
    %267 = arith.mulf %251, %259 : vector<8x128xf32>
    %268 = arith.addf %266, %267 : vector<8x128xf32>
    %269 = math.tanh %268 : vector<8x128xf32>
    %270 = arith.mulf %265, %269 : vector<8x128xf32>
    %271 = vector.extract_strided_slice %71 {offsets = [56, 0], sizes = [8, 512], strides = [1, 1]} : vector<64x512xf32> to vector<8x512xf32>
    %cst_99 = arith.constant dense<0.000000e+00> : vector<8x512xf32>
    %272 = tpu.matmul %270, %72, %cst_99 {dimension_numbers = #tpu.dot_dimension_numbers<[1], [0], [0], [1], [0, 0, 1, 1], [], []>} : vector<8x128xf32>, vector<128x512xf32>, vector<8x512xf32> -> vector<8x512xf32>
    %273 = arith.addf %271, %272 : vector<8x512xf32>
    %274 = vector.extract_strided_slice %273 {offsets = [0, 0], sizes = [8, 128], strides = [1, 1]} : vector<8x512xf32> to vector<8x128xf32>
    %275 = arith.negf %274 : vector<8x128xf32>
    %276 = math.exp %275 : vector<8x128xf32>
    %cst_100 = arith.constant 1.000000e+00 : f32
    %277 = vector.broadcast %cst_100 : f32 to vector<8x128xf32>
    %278 = arith.addf %277, %276 : vector<8x128xf32>
    %279 = arith.divf %277, %278 : vector<8x128xf32>
    %280 = vector.extract_strided_slice %273 {offsets = [0, 128], sizes = [8, 128], strides = [1, 1]} : vector<8x512xf32> to vector<8x128xf32>
    %281 = arith.negf %280 : vector<8x128xf32>
    %282 = math.exp %281 : vector<8x128xf32>
    %cst_101 = arith.constant 1.000000e+00 : f32
    %283 = vector.broadcast %cst_101 : f32 to vector<8x128xf32>
    %284 = arith.addf %283, %282 : vector<8x128xf32>
    %285 = arith.divf %283, %284 : vector<8x128xf32>
    %286 = vector.extract_strided_slice %273 {offsets = [0, 256], sizes = [8, 128], strides = [1, 1]} : vector<8x512xf32> to vector<8x128xf32>
    %287 = math.tanh %286 : vector<8x128xf32>
    %288 = vector.extract_strided_slice %273 {offsets = [0, 384], sizes = [8, 128], strides = [1, 1]} : vector<8x512xf32> to vector<8x128xf32>
    %289 = arith.negf %288 : vector<8x128xf32>
    %290 = math.exp %289 : vector<8x128xf32>
    %cst_102 = arith.constant 1.000000e+00 : f32
    %291 = vector.broadcast %cst_102 : f32 to vector<8x128xf32>
    %292 = arith.addf %291, %290 : vector<8x128xf32>
    %293 = arith.divf %291, %292 : vector<8x128xf32>
    %294 = arith.mulf %285, %268 : vector<8x128xf32>
    %295 = arith.mulf %279, %287 : vector<8x128xf32>
    %296 = arith.addf %294, %295 : vector<8x128xf32>
    %297 = math.tanh %296 : vector<8x128xf32>
    %298 = arith.mulf %293, %297 : vector<8x128xf32>
    %c0_103 = arith.constant 0 : index
    %c0_104 = arith.constant 0 : index
    %299 = vector.load %arg6[%c0_103, %c0_104] : memref<128x128xf32, #tpu.memory_space<vmem>>, vector<128x128xf32>
    %cst_105 = arith.constant dense<0.000000e+00> : vector<8x128xf32>
    %300 = tpu.matmul %298, %299, %cst_105 {dimension_numbers = #tpu.dot_dimension_numbers<[1], [0], [0], [1], [0, 0, 1, 1], [], []>} : vector<8x128xf32>, vector<128x128xf32>, vector<8x128xf32> -> vector<8x128xf32>
    %c0_106 = arith.constant 0 : index
    %c0_107 = arith.constant 0 : index
    %301 = vector.load %arg7[%c0_106, %c0_107] : memref<1x128xf32, #tpu.memory_space<vmem>>, vector<1x128xf32>
    %302 = vector.broadcast %301 : vector<1x128xf32> to vector<8x128xf32>
    %303 = arith.addf %300, %302 : vector<8x128xf32>
    %c0_108 = arith.constant 0 : index
    %c0_109 = arith.constant 0 : index
    %304 = vector.load %arg8[%c0_108, %c0_109] : memref<8x128xf32, #tpu.memory_space<vmem>>, vector<8x128xf32>
    tpu.vector_store %arg8[%c0_108, %c0_109], %303 {strides = array<i32>} : memref<8x128xf32, #tpu.memory_space<vmem>>, vector<8x128xf32>,
    return
  }
  func.func @transform_0(%arg0: i32, %arg1: memref<2x8xi32, #tpu.memory_space<smem>>) -> (i32, i32) {
    %c0_i32 = arith.constant 0 : i32
    %c0_i32_0 = arith.constant 0 : i32
    %c0_i32_1 = arith.constant 0 : i32
    return %c0_i32, %c0_i32_0 : i32, i32
  }
  func.func @transform_1(%arg0: i32, %arg1: memref<2x8xi32, #tpu.memory_space<smem>>) -> (i32, i32) {
    %c0_i32 = arith.constant 0 : i32
    %c0_i32_0 = arith.constant 0 : i32
    %c0_i32_1 = arith.constant 0 : i32
    return %c0_i32, %c0_i32_0 : i32, i32
  }
  func.func @transform_2(%arg0: i32, %arg1: memref<2x8xi32, #tpu.memory_space<smem>>) -> (i32, i32) {
    %c0_i32 = arith.constant 0 : i32
    %c0_i32_0 = arith.constant 0 : i32
    %c0_i32_1 = arith.constant 0 : i32
    return %c0_i32, %c0_i32_0 : i32, i32
  }
  func.func @transform_3(%arg0: i32, %arg1: memref<2x8xi32, #tpu.memory_space<smem>>) -> (i32, i32) {
    %c0_i32 = arith.constant 0 : i32
    %c0_i32_0 = arith.constant 0 : i32
    %c0_i32_1 = arith.constant 0 : i32
    return %c0_i32, %c0_i32_0 : i32, i32
  }
  func.func @transform_4(%arg0: i32, %arg1: memref<2x8xi32, #tpu.memory_space<smem>>) -> (i32, i32) {
    %c0_i32 = arith.constant 0 : i32
    %c0_i32_0 = arith.constant 0 : i32
    %c0_i32_1 = arith.constant 0 : i32
    return %c0_i32, %c0_i32_0 : i32, i32
  }
  func.func @transform_5(%arg0: i32, %arg1: memref<2x8xi32, #tpu.memory_space<smem>>) -> (i32, i32) {
    %c0_i32 = arith.constant 0 : i32
    %c0_i32_0 = arith.constant 0 : i32
    %c0_i32_1 = arith.constant 0 : i32
    return %c0_i32, %c0_i32_0 : i32, i32
  }
  func.func @transform_6(%arg0: i32, %arg1: memref<2x8xi32, #tpu.memory_space<smem>>) -> (i32, i32) {
    %c0_i32 = arith.constant 0 : i32
    %c0_i32_0 = arith.constant 0 : i32
    %c0_i32_1 = arith.constant 0 : i32
    return %c0_i32, %c0_i32_0 : i32, i32
  }
}

</mosaic_0001>

<llo_original>
// kernel: tpu_custom_call.1
$region0: #{tpu_custom_call.1}
  #allocation0 [shape = 'u32[]', space=smem, size = 0x4, offset = 0x4, fixed_abs, tag = 'smem constant byte address 0x4 - core index']
  #allocation1 [shape = 'u32[144,128]{1,0:T(1,128)}', space=vmem, size = 0x12000, scoped, tag = 'internal scratch']
  #allocation2 [shape = 'f32[64,128]{1,0:T(8,128)}', space=vmem, size = 0x8000, scoped, tag = 'scratch operand']
  #allocation3 [shape = 's32[1]{0}', space=sflag, size = 0x4, scoped, tag = 'scoped memory for tpu_custom_call.1']
  #allocation4 [shape = 'u8[1024]{0}', space=smem, size = 0x400, scoped, tag = 'prefetched SMEM operand 0']
  %s0 = inlined_call_operand.hbm [shape: s32[2,8], index: 0, kind: input, shape index: {}]
  %s1 = inlined_call_operand.hbm [shape: f32[50,128], index: 1, kind: input, shape index: {}]
  %s2 = inlined_call_operand.hbm [shape: f32[128,512], index: 2, kind: input, shape index: {}]
  %s3 = inlined_call_operand.hbm [shape: f32[128,512], index: 3, kind: input, shape index: {}]
  %s4 = inlined_call_operand.vmem [shape: f32[1,512], index: 4, kind: input, shape index: {}]
  %s5 = inlined_call_operand.hbm [shape: f32[128,128], index: 5, kind: input, shape index: {}]
  %s6 = inlined_call_operand.vmem [shape: f32[1,128], index: 6, kind: input, shape index: {}]
  %s7 = inlined_call_operand.hbm [shape: f32[8,128], index: 7, kind: output, shape index: {}]
  %s8 = sld [smem:[#allocation0]]
  $region50: #{tpu_custom_call.1} parent=0
    _
  %s10 = ssub.s32 1, %s8
  %s11 = scalar_select 0, %s10, %s8
  %13 = dma.hbm_to_smem %s0, 32, [#allocation4], [#allocation3]
  %14 = dma.done [#allocation3], 32
  %15 = sfence
  $region1: #{tpu_custom_call.1} parent=0
    #allocation5 [shape = 'u8[28672]{0}', space=vmem, size = 0x7000, scoped, tag = 'input window, operand 1, single buffered']
    #allocation6 [shape = 's32[1]{0}', space=sflag, size = 0x4, scoped, tag = 'scoped memory for tpu_custom_call.1']
    #allocation7 [shape = 's32[1]{0}', space=sflag, size = 0x4, scoped, tag = 'scoped memory for tpu_custom_call.1']
    #allocation8 [shape = 'u8[262144]{0}', space=vmem, size = 0x40000, scoped, tag = 'input window, operand 2, single buffered']
    #allocation9 [shape = 's32[1]{0}', space=sflag, size = 0x4, scoped, tag = 'scoped memory for tpu_custom_call.1']
    #allocation10 [shape = 'u8[262144]{0}', space=vmem, size = 0x40000, scoped, tag = 'input window, operand 3, single buffered']
    #allocation11 [shape = 'u8[65536]{0}', space=vmem, size = 0x10000, scoped, tag = 'input window, operand 5, single buffered']
    #allocation12 [shape = 's32[1]{0}', space=sflag, size = 0x4, scoped, tag = 'scoped memory for tpu_custom_call.1']
    #allocation13 [shape = 'u8[4096]{0}', space=vmem, size = 0x1000, scoped, tag = 'output window, operand 0, single buffered']
    %16 = vsyncpa [#allocation6], 0
    %17 = vsyncpa [#allocation9], 0
    %18 = vsyncpa [#allocation12], 0
    %19 = vsyncpa [#allocation7], 0
    // Predicated region
    $region2: #{tpu_custom_call.1} parent=1 // pred_check
      _
    $region3: #{tpu_custom_call.1} parent=1 // pred_check_branch
      %21 = sbr.rel (0) target = $region5
    $region4: #{tpu_custom_call.1} parent=1 // pred_region
      %s23 = ssub.s32 896, 896
      %24 = vsyncadd [#allocation6], %s23
      %s25 = sshll.u32 [#allocation5], 4
      %s26 = int_to_ptr.vmem [resolvable:$true] %s25
      %31 = dma.hbm_to_vmem [thread:$0]  %s1, 896, %s26, [#allocation6], 128, 128, 8
    $region5: #{tpu_custom_call.1} parent=1 // pred_fallthru
      _
    // Predicated region
    $region6: #{tpu_custom_call.1} parent=1 // pred_check
      _
    $region7: #{tpu_custom_call.1} parent=1 // pred_check_branch
      %33 = sbr.rel (0) target = $region9
    $region8: #{tpu_custom_call.1} parent=1 // pred_region
      %s35 = ssub.s32 8192, 8192
      %36 = vsyncadd [#allocation9], %s35
      %s37 = sshll.u32 [#allocation8], 4
      %s38 = int_to_ptr.vmem [resolvable:$true] %s37
      %43 = dma.hbm_to_vmem [thread:$0]  %s2, 8192, %s38, [#allocation9], 512, 512, 32
    $region9: #{tpu_custom_call.1} parent=1 // pred_fallthru
      _
    // Predicated region
    $region10: #{tpu_custom_call.1} parent=1 // pred_check
      _
    $region11: #{tpu_custom_call.1} parent=1 // pred_check_branch
      %45 = sbr.rel (0) target = $region13
    $region12: #{tpu_custom_call.1} parent=1 // pred_region
      %s47 = ssub.s32 8192, 8192
      %48 = vsyncadd [#allocation9], %s47
      %s49 = sshll.u32 [#allocation10], 4
      %s50 = int_to_ptr.vmem [resolvable:$true] %s49
      %55 = dma.hbm_to_vmem [thread:$0]  %s3, 8192, %s50, [#allocation9], 512, 512, 32
    $region13: #{tpu_custom_call.1} parent=1 // pred_fallthru
      _
    // Predicated region
    $region14: #{tpu_custom_call.1} parent=1 // pred_check
      _
    $region15: #{tpu_custom_call.1} parent=1 // pred_check_branch
      %57 = sbr.rel (0) target = $region17
    $region16: #{tpu_custom_call.1} parent=1 // pred_region
      _
    $region17: #{tpu_custom_call.1} parent=1 // pred_fallthru
      _
    // Predicated region
    $region18: #{tpu_custom_call.1} parent=1 // pred_check
      _
    $region19: #{tpu_custom_call.1} parent=1 // pred_check_branch
      %59 = sbr.rel (0) target = $region21
    $region20: #{tpu_custom_call.1} parent=1 // pred_region
      %s61 = ssub.s32 2048, 2048
      %62 = vsyncadd [#allocation12], %s61
      %s63 = sshll.u32 [#allocation11], 4
      %s64 = int_to_ptr.vmem [resolvable:$true] %s63
      %69 = dma.hbm_to_vmem [thread:$0]  %s5, 2048, %s64, [#allocation12], 128, 128, 8
    $region21: #{tpu_custom_call.1} parent=1 // pred_fallthru
      _
    // Predicated region
    $region22: #{tpu_custom_call.1} parent=1 // pred_check
      _
    $region23: #{tpu_custom_call.1} parent=1 // pred_check_branch
      %71 = sbr.rel (0) target = $region25
    $region24: #{tpu_custom_call.1} parent=1 // pred_region
      _
    $region25: #{tpu_custom_call.1} parent=1 // pred_fallthru
      _
    // Predicated region
    $region26: #{tpu_custom_call.1} parent=1 // pred_check
      _
    $region27: #{tpu_custom_call.1} parent=1 // pred_check_branch
      %73 = sbr.rel (0) target = $region29
    $region28: #{tpu_custom_call.1} parent=1 // pred_region
      %74 = dma.done [#allocation6], 896
    $region29: #{tpu_custom_call.1} parent=1 // pred_fallthru
      _
    // Predicated region
    $region30: #{tpu_custom_call.1} parent=1 // pred_check
      _
    $region31: #{tpu_custom_call.1} parent=1 // pred_check_branch
      %76 = sbr.rel (0) target = $region33
    $region32: #{tpu_custom_call.1} parent=1 // pred_region
      %77 = dma.done [#allocation9], 8192
    $region33: #{tpu_custom_call.1} parent=1 // pred_fallthru
      _
    // Predicated region
    $region34: #{tpu_custom_call.1} parent=1 // pred_check
      _
    $region35: #{tpu_custom_call.1} parent=1 // pred_check_branch
      %79 = sbr.rel (0) target = $region37
    $region36: #{tpu_custom_call.1} parent=1 // pred_region
      %80 = dma.done [#allocation9], 8192
    $region37: #{tpu_custom_call.1} parent=1 // pred_fallthru
      _
    // Predicated region
    $region38: #{tpu_custom_call.1} parent=1 // pred_check
      _
    $region39: #{tpu_custom_call.1} parent=1 // pred_check_branch
      %82 = sbr.rel (0) target = $region41
    $region40: #{tpu_custom_call.1} parent=1 // pred_region
      %83 = dma.done [#allocation12], 2048
    $region41: #{tpu_custom_call.1} parent=1 // pred_fallthru
      _
    %84 = vst [vmem:[#allocation2] sm:$0xff] 0.0
    %85 = vst [vmem:[#allocation2 + $0x8] sm:$0xff] 0.0
    %86 = vst [vmem:[#allocation2 + $0x10] sm:$0xff] 0.0
    %87 = vst [vmem:[#allocation2 + $0x18] sm:$0xff] 0.0
    %88 = vst [vmem:[#allocation2 + $0x20] sm:$0xff] 0.0
    %89 = vst [vmem:[#allocation2 + $0x28] sm:$0xff] 0.0
    %90 = vst [vmem:[#allocation2 + $0x30] sm:$0xff] 0.0
    %91 = vst [vmem:[#allocation2 + $0x38] sm:$0xff] 0.0
    %s92 = sld [smem:[#allocation4]]
    %s93 = scalar_lea.vmem [#allocation5], %s92
    %v94 = vld [vmem:[%s93] sm:$0x1]
    %95 = vst [vmem:[#allocation2] sm:$0x1] %v94
    %s96 = sld [smem:[#allocation4 + $0x80]]
    %s97 = scalar_lea.vmem [#allocation5], %s96
    %v98 = vld [vmem:[%s97] sm:$0x1]
    %99 = vst [vmem:[#allocation2 + $0x1] sm:$0x1] %v98
    %s100 = sld [smem:[#allocation4 + $0x1]]
    %s101 = scalar_lea.vmem [#allocation5], %s100
    %v102 = vld [vmem:[%s101] sm:$0x1]
    %103 = vst [vmem:[#allocation2 + $0x8] sm:$0x1] %v102
    %s104 = sld [smem:[#allocation4 + $0x81]]
    %s105 = scalar_lea.vmem [#allocation5], %s104
    %v106 = vld [vmem:[%s105] sm:$0x1]
    %107 = vst [vmem:[#allocation2 + $0x9] sm:$0x1] %v106
    %s108 = sld [smem:[#allocation4 + $0x2]]
    %s109 = scalar_lea.vmem [#allocation5], %s108
    %v110 = vld [vmem:[%s109] sm:$0x1]
    %111 = vst [vmem:[#allocation2 + $0x10] sm:$0x1] %v110
    %s112 = sld [smem:[#allocation4 + $0x82]]
    %s113 = scalar_lea.vmem [#allocation5], %s112
    %v114 = vld [vmem:[%s113] sm:$0x1]
    %115 = vst [vmem:[#allocation2 + $0x11] sm:$0x1] %v114
    %s116 = sld [smem:[#allocation4 + $0x3]]
    %s117 = scalar_lea.vmem [#allocation5], %s116
    %v118 = vld [vmem:[%s117] sm:$0x1]
    %119 = vst [vmem:[#allocation2 + $0x18] sm:$0x1] %v118
    %s120 = sld [smem:[#allocation4 + $0x83]]
    %s121 = scalar_lea.vmem [#allocation5], %s120
    %v122 = vld [vmem:[%s121] sm:$0x1]
    %123 = vst [vmem:[#allocation2 + $0x19] sm:$0x1] %v122
    %s124 = sld [smem:[#allocation4 + $0x4]]
    %s125 = scalar_lea.vmem [#allocation5], %s124
    %v126 = vld [vmem:[%s125] sm:$0x1]
    %127 = vst [vmem:[#allocation2 + $0x20] sm:$0x1] %v126
    %s128 = sld [smem:[#allocation4 + $0x84]]
    %s129 = scalar_lea.vmem [#allocation5], %s128
    %v130 = vld [vmem:[%s129] sm:$0x1]
    %131 = vst [vmem:[#allocation2 + $0x21] sm:$0x1] %v130
    %s132 = sld [smem:[#allocation4 + $0x5]]
    %s133 = scalar_lea.vmem [#allocation5], %s132
    %v134 = vld [vmem:[%s133] sm:$0x1]
    %135 = vst [vmem:[#allocation2 + $0x28] sm:$0x1] %v134
    %s136 = sld [smem:[#allocation4 + $0x85]]
    %s137 = scalar_lea.vmem [#allocation5], %s136
    %v138 = vld [vmem:[%s137] sm:$0x1]
    %139 = vst [vmem:[#allocation2 + $0x29] sm:$0x1] %v138
    %s140 = sld [smem:[#allocation4 + $0x6]]
    %s141 = scalar_lea.vmem [#allocation5], %s140
    %v142 = vld [vmem:[%s141] sm:$0x1]
    %143 = vst [vmem:[#allocation2 + $0x30] sm:$0x1] %v142
    %s144 = sld [smem:[#allocation4 + $0x86]]
    %s145 = scalar_lea.vmem [#allocation5], %s144
    %v146 = vld [vmem:[%s145] sm:$0x1]
    %147 = vst [vmem:[#allocation2 + $0x31] sm:$0x1] %v146
    %s148 = sld [smem:[#allocation4 + $0x7]]
    %s149 = scalar_lea.vmem [#allocation5], %s148
    %v150 = vld [vmem:[%s149] sm:$0x1]
    %151 = vst [vmem:[#allocation2 + $0x38] sm:$0x1] %v150
    %s152 = sld [smem:[#allocation4 + $0x87]]
    %s153 = scalar_lea.vmem [#allocation5], %s152
    %v154 = vld [vmem:[%s153] sm:$0x1]
    %155 = vst [vmem:[#allocation2 + $0x39] sm:$0x1] %v154
    %v156 = vld [vmem:[#allocation2] sm:$0xff]
    %v157 = vld [vmem:[#allocation2 + $0x8] sm:$0xff]
    %v158 = vld [vmem:[#allocation2 + $0x10] sm:$0xff]
    %v159 = vld [vmem:[#allocation2 + $0x18] sm:$0xff]
    %v160 = vld [vmem:[#allocation2 + $0x20] sm:$0xff]
    %v161 = vld [vmem:[#allocation2 + $0x28] sm:$0xff]
    %v162 = vld [vmem:[#allocation2 + $0x30] sm:$0xff]
    %v163 = vld [vmem:[#allocation2 + $0x38] sm:$0xff]
    %v164 = vld [vmem:[#allocation8] sm:$0xff]
    %v165 = vld [vmem:[#allocation8 + $0x8] sm:$0xff]
    %v166 = vld [vmem:[#allocation8 + $0x10] sm:$0xff]
    %v167 = vld [vmem:[#allocation8 + $0x18] sm:$0xff]
    %v168 = vld [vmem:[#allocation8 + $0x20] sm:$0xff]
    %v169 = vld [vmem:[#allocation8 + $0x28] sm:$0xff]
    %v170 = vld [vmem:[#allocation8 + $0x30] sm:$0xff]
    %v171 = vld [vmem:[#allocation8 + $0x38] sm:$0xff]
    %v172 = vld [vmem:[#allocation8 + $0x40] sm:$0xff]
    %v173 = vld [vmem:[#allocation8 + $0x48] sm:$0xff]
    %v174 = vld [vmem:[#allocation8 + $0x50] sm:$0xff]
    %v175 = vld [vmem:[#allocation8 + $0x58] sm:$0xff]
    %v176 = vld [vmem:[#allocation8 + $0x60] sm:$0xff]
    %v177 = vld [vmem:[#allocation8 + $0x68] sm:$0xff]
    %v178 = vld [vmem:[#allocation8 + $0x70] sm:$0xff]
    %v179 = vld [vmem:[#allocation8 + $0x78] sm:$0xff]
    %v180 = vld [vmem:[#allocation8 + $0x80] sm:$0xff]
    %v181 = vld [vmem:[#allocation8 + $0x88] sm:$0xff]
    %v182 = vld [vmem:[#allocation8 + $0x90] sm:$0xff]
    %v183 = vld [vmem:[#allocation8 + $0x98] sm:$0xff]
    %v184 = vld [vmem:[#allocation8 + $0xa0] sm:$0xff]
    %v185 = vld [vmem:[#allocation8 + $0xa8] sm:$0xff]
    %v186 = vld [vmem:[#allocation8 + $0xb0] sm:$0xff]
    %v187 = vld [vmem:[#allocation8 + $0xb8] sm:$0xff]
    %v188 = vld [vmem:[#allocation8 + $0xc0] sm:$0xff]
    %v189 = vld [vmem:[#allocation8 + $0xc8] sm:$0xff]
    %v190 = vld [vmem:[#allocation8 + $0xd0] sm:$0xff]
    %v191 = vld [vmem:[#allocation8 + $0xd8] sm:$0xff]
    %v192 = vld [vmem:[#allocation8 + $0xe0] sm:$0xff]
    %v193 = vld [vmem:[#allocation8 + $0xe8] sm:$0xff]
    %v194 = vld [vmem:[#allocation8 + $0xf0] sm:$0xff]
    %v195 = vld [vmem:[#allocation8 + $0xf8] sm:$0xff]
    %v196 = vld [vmem:[#allocation8 + $0x100] sm:$0xff]
    %v197 = vld [vmem:[#allocation8 + $0x108] sm:$0xff]
    %v198 = vld [vmem:[#allocation8 + $0x110] sm:$0xff]
    %v199 = vld [vmem:[#allocation8 + $0x118] sm:$0xff]
    %v200 = vld [vmem:[#allocation8 + $0x120] sm:$0xff]
    %v201 = vld [vmem:[#allocation8 + $0x128] sm:$0xff]
    %v202 = vld [vmem:[#allocation8 + $0x130] sm:$0xff]
    %v203 = vld [vmem:[#allocation8 + $0x138] sm:$0xff]
    %v204 = vld [vmem:[#allocation8 + $0x140] sm:$0xff]
    %v205 = vld [vmem:[#allocation8 + $0x148] sm:$0xff]
    %v206 = vld [vmem:[#allocation8 + $0x150] sm:$0xff]
    %v207 = vld [vmem:[#allocation8 + $0x158] sm:$0xff]
    %v208 = vld [vmem:[#allocation8 + $0x160] sm:$0xff]
    %v209 = vld [vmem:[#allocation8 + $0x168] sm:$0xff]
    %v210 = vld [vmem:[#allocation8 + $0x170] sm:$0xff]
    %v211 = vld [vmem:[#allocation8 + $0x178] sm:$0xff]
    %v212 = vld [vmem:[#allocation8 + $0x180] sm:$0xff]
    %v213 = vld [vmem:[#allocation8 + $0x188] sm:$0xff]
    %v214 = vld [vmem:[#allocation8 + $0x190] sm:$0xff]
    %v215 = vld [vmem:[#allocation8 + $0x198] sm:$0xff]
    %v216 = vld [vmem:[#allocation8 + $0x1a0] sm:$0xff]
    %v217 = vld [vmem:[#allocation8 + $0x1a8] sm:$0xff]
    %v218 = vld [vmem:[#allocation8 + $0x1b0] sm:$0xff]
    %v219 = vld [vmem:[#allocation8 + $0x1b8] sm:$0xff]
    %v220 = vld [vmem:[#allocation8 + $0x1c0] sm:$0xff]
    %v221 = vld [vmem:[#allocation8 + $0x1c8] sm:$0xff]
    %v222 = vld [vmem:[#allocation8 + $0x1d0] sm:$0xff]
    %v223 = vld [vmem:[#allocation8 + $0x1d8] sm:$0xff]
    %v224 = vld [vmem:[#allocation8 + $0x1e0] sm:$0xff]
    %v225 = vld [vmem:[#allocation8 + $0x1e8] sm:$0xff]
    %v226 = vld [vmem:[#allocation8 + $0x1f0] sm:$0xff]
    %v227 = vld [vmem:[#allocation8 + $0x1f8] sm:$0xff]
    %v228 = vld [vmem:[%s4] sm:$0xf]
    %v230 = vlaneseq
    %v231 = vshrl.u32 %v230, 7
    %v232 = vsub.s32 0, %v231
    %v233 = vrot.slane %v228, %v232
    %v234 = vlaneseq
    %v235 = vshrl.u32 %v234, 7
    %v236 = vsub.s32 1, %v235
    %v237 = vrot.slane %v228, %v236
    %v238 = vlaneseq
    %v239 = vshrl.u32 %v238, 7
    %v240 = vsub.s32 2, %v239
    %v241 = vrot.slane %v228, %v240
    %v242 = vlaneseq
    %v243 = vshrl.u32 %v242, 7
    %v244 = vsub.s32 3, %v243
    %v245 = vrot.slane %v228, %v244
    %250 = vmatprep.subr.mxu0 %v165
    %251 = vmatpush1.msra.mxu0 %v164
    %252 = vmatprep.subr.mxu0 %v169
    %253 = vmatpush1.msra.mxu0 %v168
    %254 = vmatprep.subr.mxu0 %v173
    %255 = vmatpush1.msra.mxu0 %v172
    %256 = vmatprep.subr.mxu0 %v177
    %257 = vmatpush1.msra.mxu0 %v176
    %258 = vmatprep.subr.mxu0 %v181
    %259 = vmatpush1.msra.mxu0 %v180
    %260 = vmatprep.subr.mxu0 %v185
    %261 = vmatpush1.msra.mxu0 %v184
    %262 = vmatprep.subr.mxu0 %v189
    %263 = vmatpush1.msra.mxu0 %v188
    %264 = vmatprep.subr.mxu0 %v193
    %265 = vmatpush1.msra.mxu0 %v192
    %266 = vmatprep.subr.mxu0 %v197
    %267 = vmatpush1.msra.mxu0 %v196
    %268 = vmatprep.subr.mxu0 %v201
    %269 = vmatpush1.msra.mxu0 %v200
    %270 = vmatprep.subr.mxu0 %v205
    %271 = vmatpush1.msra.mxu0 %v204
    %272 = vmatprep.subr.mxu0 %v209
    %273 = vmatpush1.msra.mxu0 %v208
    %274 = vmatprep.subr.mxu0 %v213
    %275 = vmatpush1.msra.mxu0 %v212
    %276 = vmatprep.subr.mxu0 %v217
    %277 = vmatpush1.msra.mxu0 %v216
    %278 = vmatprep.subr.mxu0 %v221
    %279 = vmatpush1.msra.mxu0 %v220
    %280 = vmatprep.subr.mxu0 %v225
    %281 = vmatpush1.msra.mxu0 %v224
    %282 = vmatprep.subr.mxu0 0.0
    %283 = vmatpush1.msra.mxu0 0.0
    %284 = vmatprep.subr.mxu0 0.0
    %285 = vmatpush1.msra.mxu0 0.0
    %286 = vmatprep.subr.mxu0 0.0
    %287 = vmatpush1.msra.mxu0 0.0
    %288 = vmatprep.subr.mxu0 0.0
    %289 = vmatpush1.msra.mxu0 0.0
    %290 = vmatprep.subr.mxu0 0.0
    %291 = vmatpush1.msra.mxu0 0.0
    %292 = vmatprep.subr.mxu0 0.0
    %293 = vmatpush1.msra.mxu0 0.0
    %294 = vmatprep.subr.mxu0 0.0
    %295 = vmatpush1.msra.mxu0 0.0
    %296 = vmatprep.subr.mxu0 0.0
    %297 = vmatpush1.msra.mxu0 0.0
    %298 = vmatprep.subr.mxu0 0.0
    %299 = vmatpush1.msra.mxu0 0.0
    %300 = vmatprep.subr.mxu0 0.0
    %301 = vmatpush1.msra.mxu0 0.0
    %302 = vmatprep.subr.mxu0 0.0
    %303 = vmatpush1.msra.mxu0 0.0
    %304 = vmatprep.subr.mxu0 0.0
    %305 = vmatpush1.msra.mxu0 0.0
    %306 = vmatprep.subr.mxu0 0.0
    %307 = vmatpush1.msra.mxu0 0.0
    %308 = vmatprep.subr.mxu0 0.0
    %309 = vmatpush1.msra.mxu0 0.0
    %310 = vmatprep.subr.mxu0 0.0
    %311 = vmatpush1.msra.mxu0 0.0
    %312 = vmatprep.subr.mxu0 0.0
    %313 = vmatpush1.msra.mxu0 0.0
    %314 = vmatprep.mubr.f32.mxu0 0.0
    %315 = vmatmul.mubr.f32.gmra.mrb[0].mxu0 %v156
    %v316 = vpop.f32.mrb[0].mxu0
    %v317 = vadd.f32 %v233, %v316
    %v318 = vpop.f32.mrb[0].mxu0
    %v319 = vadd.f32 %v237, %v318
    %320 = vmatprep.mubr.f32.mxu0 0.0
    %321 = vmatmul.mubr.f32.gmra.mrb[0].mxu0 %v157
    %v322 = vpop.f32.mrb[0].mxu0
    %v323 = vadd.f32 %v233, %v322
    %v324 = vpop.f32.mrb[0].mxu0
    %v325 = vadd.f32 %v237, %v324
    %326 = vmatprep.mubr.f32.mxu0 0.0
    %327 = vmatmul.mubr.f32.gmra.mrb[0].mxu0 %v158
    %v328 = vpop.f32.mrb[0].mxu0
    %v329 = vadd.f32 %v233, %v328
    %v330 = vpop.f32.mrb[0].mxu0
    %v331 = vadd.f32 %v237, %v330
    %332 = vmatprep.mubr.f32.mxu0 0.0
    %333 = vmatmul.mubr.f32.gmra.mrb[0].mxu0 %v159
    %v334 = vpop.f32.mrb[0].mxu0
    %v335 = vadd.f32 %v233, %v334
    %v336 = vpop.f32.mrb[0].mxu0
    %v337 = vadd.f32 %v237, %v336
    %338 = vmatprep.mubr.f32.mxu0 0.0
    %339 = vmatmul.mubr.f32.gmra.mrb[0].mxu0 %v160
    %v340 = vpop.f32.mrb[0].mxu0
    %v341 = vadd.f32 %v233, %v340
    %v342 = vpop.f32.mrb[0].mxu0
    %v343 = vadd.f32 %v237, %v342
    %344 = vmatprep.mubr.f32.mxu0 0.0
    %345 = vmatmul.mubr.f32.gmra.mrb[0].mxu0 %v161
    %v346 = vpop.f32.mrb[0].mxu0
    %v347 = vadd.f32 %v233, %v346
    %v348 = vpop.f32.mrb[0].mxu0
    %v349 = vadd.f32 %v237, %v348
    %350 = vmatprep.mubr.f32.mxu0 0.0
    %351 = vmatmul.mubr.f32.gmra.mrb[0].mxu0 %v162
    %v352 = vpop.f32.mrb[0].mxu0
    %v353 = vadd.f32 %v233, %v352
    %v354 = vpop.f32.mrb[0].mxu0
    %v355 = vadd.f32 %v237, %v354
    %356 = vmatprep.mubr.f32.mxu0 0.0
    %357 = vmatmul.mubr.f32.gmra.mrb[0].mxu0 %v163
    %v358 = vpop.f32.mrb[0].mxu0
    %v359 = vadd.f32 %v233, %v358
    %v360 = vpop.f32.mrb[0].mxu0
    %v361 = vadd.f32 %v237, %v360
    %362 = vdwg.mxu0
    %363 = vmatprep.subr.mxu0 %v167
    %364 = vmatpush1.msra.mxu0 %v166
    %365 = vmatprep.subr.mxu0 %v171
    %366 = vmatpush1.msra.mxu0 %v170
    %367 = vmatprep.subr.mxu0 %v175
    %368 = vmatpush1.msra.mxu0 %v174
    %369 = vmatprep.subr.mxu0 %v179
    %370 = vmatpush1.msra.mxu0 %v178
    %371 = vmatprep.subr.mxu0 %v183
    %372 = vmatpush1.msra.mxu0 %v182
    %373 = vmatprep.subr.mxu0 %v187
    %374 = vmatpush1.msra.mxu0 %v186
    %375 = vmatprep.subr.mxu0 %v191
    %376 = vmatpush1.msra.mxu0 %v190
    %377 = vmatprep.subr.mxu0 %v195
    %378 = vmatpush1.msra.mxu0 %v194
    %379 = vmatprep.subr.mxu0 %v199
    %380 = vmatpush1.msra.mxu0 %v198
    %381 = vmatprep.subr.mxu0 %v203
    %382 = vmatpush1.msra.mxu0 %v202
    %383 = vmatprep.subr.mxu0 %v207
    %384 = vmatpush1.msra.mxu0 %v206
    %385 = vmatprep.subr.mxu0 %v211
    %386 = vmatpush1.msra.mxu0 %v210
    %387 = vmatprep.subr.mxu0 %v215
    %388 = vmatpush1.msra.mxu0 %v214
    %389 = vmatprep.subr.mxu0 %v219
    %390 = vmatpush1.msra.mxu0 %v218
    %391 = vmatprep.subr.mxu0 %v223
    %392 = vmatpush1.msra.mxu0 %v222
    %393 = vmatprep.subr.mxu0 %v227
    %394 = vmatpush1.msra.mxu0 %v226
    %395 = vmatprep.subr.mxu0 0.0
    %396 = vmatpush1.msra.mxu0 0.0
    %397 = vmatprep.subr.mxu0 0.0
    %398 = vmatpush1.msra.mxu0 0.0
    %399 = vmatprep.subr.mxu0 0.0
    %400 = vmatpush1.msra.mxu0 0.0
    %401 = vmatprep.subr.mxu0 0.0
    %402 = vmatpush1.msra.mxu0 0.0
    %403 = vmatprep.subr.mxu0 0.0
    %404 = vmatpush1.msra.mxu0 0.0
    %405 = vmatprep.subr.mxu0 0.0
    %406 = vmatpush1.msra.mxu0 0.0
    %407 = vmatprep.subr.mxu0 0.0
    %408 = vmatpush1.msra.mxu0 0.0
    %409 = vmatprep.subr.mxu0 0.0
    %410 = vmatpush1.msra.mxu0 0.0
    %411 = vmatprep.subr.mxu0 0.0
    %412 = vmatpush1.msra.mxu0 0.0
    %413 = vmatprep.subr.mxu0 0.0
    %414 = vmatpush1.msra.mxu0 0.0
    %415 = vmatprep.subr.mxu0 0.0
    %416 = vmatpush1.msra.mxu0 0.0
    %417 = vmatprep.subr.mxu0 0.0
    %418 = vmatpush1.msra.mxu0 0.0
    %419 = vmatprep.subr.mxu0 0.0
    %420 = vmatpush1.msra.mxu0 0.0
    %421 = vmatprep.subr.mxu0 0.0
    %422 = vmatpush1.msra.mxu0 0.0
    %423 = vmatprep.subr.mxu0 0.0
    %424 = vmatpush1.msra.mxu0 0.0
    %425 = vmatprep.subr.mxu0 0.0
    %426 = vmatpush1.msra.mxu0 0.0
    %427 = vmatprep.mubr.f32.mxu0 0.0
    %428 = vmatmul.mubr.f32.gmra.mrb[0].mxu0 %v156
    %v429 = vpop.f32.mrb[0].mxu0
    %v430 = vadd.f32 %v241, %v429
    %v431 = vpop.f32.mrb[0].mxu0
    %v432 = vadd.f32 %v245, %v431
    %433 = vmatprep.mubr.f32.mxu0 0.0
    %434 = vmatmul.mubr.f32.gmra.mrb[0].mxu0 %v157
    %v435 = vpop.f32.mrb[0].mxu0
    %v436 = vadd.f32 %v241, %v435
    %v437 = vpop.f32.mrb[0].mxu0
    %v438 = vadd.f32 %v245, %v437
    %439 = vmatprep.mubr.f32.mxu0 0.0
    %440 = vmatmul.mubr.f32.gmra.mrb[0].mxu0 %v158
    %v441 = vpop.f32.mrb[0].mxu0
    %v442 = vadd.f32 %v241, %v441
    %v443 = vpop.f32.mrb[0].mxu0
    %v444 = vadd.f32 %v245, %v443
    %445 = vmatprep.mubr.f32.mxu0 0.0
    %446 = vmatmul.mubr.f32.gmra.mrb[0].mxu0 %v159
    %v447 = vpop.f32.mrb[0].mxu0
    %v448 = vadd.f32 %v241, %v447
    %v449 = vpop.f32.mrb[0].mxu0
    %v450 = vadd.f32 %v245, %v449
    %451 = vmatprep.mubr.f32.mxu0 0.0
    %452 = vmatmul.mubr.f32.gmra.mrb[0].mxu0 %v160
    %v453 = vpop.f32.mrb[0].mxu0
    %v454 = vadd.f32 %v241, %v453
    %v455 = vpop.f32.mrb[0].mxu0
    %v456 = vadd.f32 %v245, %v455
    %457 = vmatprep.mubr.f32.mxu0 0.0
    %458 = vmatmul.mubr.f32.gmra.mrb[0].mxu0 %v161
    %v459 = vpop.f32.mrb[0].mxu0
    %v460 = vadd.f32 %v241, %v459
    %v461 = vpop.f32.mrb[0].mxu0
    %v462 = vadd.f32 %v245, %v461
    %463 = vmatprep.mubr.f32.mxu0 0.0
    %464 = vmatmul.mubr.f32.gmra.mrb[0].mxu0 %v162
    %v465 = vpop.f32.mrb[0].mxu0
    %v466 = vadd.f32 %v241, %v465
    %v467 = vpop.f32.mrb[0].mxu0
    %v468 = vadd.f32 %v245, %v467
    %469 = vmatprep.mubr.f32.mxu0 0.0
    %470 = vmatmul.mubr.f32.gmra.mrb[0].mxu0 %v163
    %v471 = vpop.f32.mrb[0].mxu0
    %v472 = vadd.f32 %v241, %v471
    %v473 = vpop.f32.mrb[0].mxu0
    %v474 = vadd.f32 %v245, %v473
    %475 = vdwg.mxu0
    %v476 = vld [vmem:[#allocation10] sm:$0xff]
    %v477 = vld [vmem:[#allocation10 + $0x8] sm:$0xff]
    %v478 = vld [vmem:[#allocation10 + $0x10] sm:$0xff]
    %v479 = vld [vmem:[#allocation10 + $0x18] sm:$0xff]
    %v480 = vld [vmem:[#allocation10 + $0x20] sm:$0xff]
    %v481 = vld [vmem:[#allocation10 + $0x28] sm:$0xff]
    %v482 = vld [vmem:[#allocation10 + $0x30] sm:$0xff]
    %v483 = vld [vmem:[#allocation10 + $0x38] sm:$0xff]
    %v484 = vld [vmem:[#allocation10 + $0x40] sm:$0xff]
    %v485 = vld [vmem:[#allocation10 + $0x48] sm:$0xff]
    %v486 = vld [vmem:[#allocation10 + $0x50] sm:$0xff]
    %v487 = vld [vmem:[#allocation10 + $0x58] sm:$0xff]
    %v488 = vld [vmem:[#allocation10 + $0x60] sm:$0xff]
    %v489 = vld [vmem:[#allocation10 + $0x68] sm:$0xff]
    %v490 = vld [vmem:[#allocation10 + $0x70] sm:$0xff]
    %v491 = vld [vmem:[#allocation10 + $0x78] sm:$0xff]
    %v492 = vld [vmem:[#allocation10 + $0x80] sm:$0xff]
    %v493 = vld [vmem:[#allocation10 + $0x88] sm:$0xff]
    %v494 = vld [vmem:[#allocation10 + $0x90] sm:$0xff]
    %v495 = vld [vmem:[#allocation10 + $0x98] sm:$0xff]
    %v496 = vld [vmem:[#allocation10 + $0xa0] sm:$0xff]
    %v497 = vld [vmem:[#allocation10 + $0xa8] sm:$0xff]
    %v498 = vld [vmem:[#allocation10 + $0xb0] sm:$0xff]
    %v499 = vld [vmem:[#allocation10 + $0xb8] sm:$0xff]
    %v500 = vld [vmem:[#allocation10 + $0xc0] sm:$0xff]
    %v501 = vld [vmem:[#allocation10 + $0xc8] sm:$0xff]
    %v502 = vld [vmem:[#allocation10 + $0xd0] sm:$0xff]
    %v503 = vld [vmem:[#allocation10 + $0xd8] sm:$0xff]
    %v504 = vld [vmem:[#allocation10 + $0xe0] sm:$0xff]
    %v505 = vld [vmem:[#allocation10 + $0xe8] sm:$0xff]
    %v506 = vld [vmem:[#allocation10 + $0xf0] sm:$0xff]
    %v507 = vld [vmem:[#allocation10 + $0xf8] sm:$0xff]
    %v508 = vld [vmem:[#allocation10 + $0x100] sm:$0xff]
    %v509 = vld [vmem:[#allocation10 + $0x108] sm:$0xff]
    %v510 = vld [vmem:[#allocation10 + $0x110] sm:$0xff]
    %v511 = vld [vmem:[#allocation10 + $0x118] sm:$0xff]
    %v512 = vld [vmem:[#allocation10 + $0x120] sm:$0xff]
    %v513 = vld [vmem:[#allocation10 + $0x128] sm:$0xff]
    %v514 = vld [vmem:[#allocation10 + $0x130] sm:$0xff]
    %v515 = vld [vmem:[#allocation10 + $0x138] sm:$0xff]
    %v516 = vld [vmem:[#allocation10 + $0x140] sm:$0xff]
    %v517 = vld [vmem:[#allocation10 + $0x148] sm:$0xff]
    %v518 = vld [vmem:[#allocation10 + $0x150] sm:$0xff]
    %v519 = vld [vmem:[#allocation10 + $0x158] sm:$0xff]
    %v520 = vld [vmem:[#allocation10 + $0x160] sm:$0xff]
    %v521 = vld [vmem:[#allocation10 + $0x168] sm:$0xff]
    %v522 = vld [vmem:[#allocation10 + $0x170] sm:$0xff]
    %v523 = vld [vmem:[#allocation10 + $0x178] sm:$0xff]
    %v524 = vld [vmem:[#allocation10 + $0x180] sm:$0xff]
    %v525 = vld [vmem:[#allocation10 + $0x188] sm:$0xff]
    %v526 = vld [vmem:[#allocation10 + $0x190] sm:$0xff]
    %v527 = vld [vmem:[#allocation10 + $0x198] sm:$0xff]
    %v528 = vld [vmem:[#allocation10 + $0x1a0] sm:$0xff]
    %v529 = vld [vmem:[#allocation10 + $0x1a8] sm:$0xff]
    %v530 = vld [vmem:[#allocation10 + $0x1b0] sm:$0xff]
    %v531 = vld [vmem:[#allocation10 + $0x1b8] sm:$0xff]
    %v532 = vld [vmem:[#allocation10 + $0x1c0] sm:$0xff]
    %v533 = vld [vmem:[#allocation10 + $0x1c8] sm:$0xff]
    %v534 = vld [vmem:[#allocation10 + $0x1d0] sm:$0xff]
    %v535 = vld [vmem:[#allocation10 + $0x1d8] sm:$0xff]
    %v536 = vld [vmem:[#allocation10 + $0x1e0] sm:$0xff]
    %v537 = vld [vmem:[#allocation10 + $0x1e8] sm:$0xff]
    %v538 = vld [vmem:[#allocation10 + $0x1f0] sm:$0xff]
    %v539 = vld [vmem:[#allocation10 + $0x1f8] sm:$0xff]
    %540 = vmatprep.subr.mxu0 %v477
    %541 = vmatpush1.msra.mxu0 %v476
    %542 = vmatprep.subr.mxu0 %v481
    %543 = vmatpush1.msra.mxu0 %v480
    %544 = vmatprep.subr.mxu0 %v485
    %545 = vmatpush1.msra.mxu0 %v484
    %546 = vmatprep.subr.mxu0 %v489
    %547 = vmatpush1.msra.mxu0 %v488
    %548 = vmatprep.subr.mxu0 %v493
    %549 = vmatpush1.msra.mxu0 %v492
    %550 = vmatprep.subr.mxu0 %v497
    %551 = vmatpush1.msra.mxu0 %v496
    %552 = vmatprep.subr.mxu0 %v501
    %553 = vmatpush1.msra.mxu0 %v500
    %554 = vmatprep.subr.mxu0 %v505
    %555 = vmatpush1.msra.mxu0 %v504
    %556 = vmatprep.subr.mxu0 %v509
    %557 = vmatpush1.msra.mxu0 %v508
    %558 = vmatprep.subr.mxu0 %v513
    %559 = vmatpush1.msra.mxu0 %v512
    %560 = vmatprep.subr.mxu0 %v517
    %561 = vmatpush1.msra.mxu0 %v516
    %562 = vmatprep.subr.mxu0 %v521
    %563 = vmatpush1.msra.mxu0 %v520
    %564 = vmatprep.subr.mxu0 %v525
    %565 = vmatpush1.msra.mxu0 %v524
    %566 = vmatprep.subr.mxu0 %v529
    %567 = vmatpush1.msra.mxu0 %v528
    %568 = vmatprep.subr.mxu0 %v533
    %569 = vmatpush1.msra.mxu0 %v532
    %570 = vmatprep.subr.mxu0 %v537
    %571 = vmatpush1.msra.mxu0 %v536
    %572 = vmatprep.subr.mxu0 0.0
    %573 = vmatpush1.msra.mxu0 0.0
    %574 = vmatprep.subr.mxu0 0.0
    %575 = vmatpush1.msra.mxu0 0.0
    %576 = vmatprep.subr.mxu0 0.0
    %577 = vmatpush1.msra.mxu0 0.0
    %578 = vmatprep.subr.mxu0 0.0
    %579 = vmatpush1.msra.mxu0 0.0
    %580 = vmatprep.subr.mxu0 0.0
    %581 = vmatpush1.msra.mxu0 0.0
    %582 = vmatprep.subr.mxu0 0.0
    %583 = vmatpush1.msra.mxu0 0.0
    %584 = vmatprep.subr.mxu0 0.0
    %585 = vmatpush1.msra.mxu0 0.0
    %586 = vmatprep.subr.mxu0 0.0
    %587 = vmatpush1.msra.mxu0 0.0
    %588 = vmatprep.subr.mxu0 0.0
    %589 = vmatpush1.msra.mxu0 0.0
    %590 = vmatprep.subr.mxu0 0.0
    %591 = vmatpush1.msra.mxu0 0.0
    %592 = vmatprep.subr.mxu0 0.0
    %593 = vmatpush1.msra.mxu0 0.0
    %594 = vmatprep.subr.mxu0 0.0
    %595 = vmatpush1.msra.mxu0 0.0
    %596 = vmatprep.subr.mxu0 0.0
    %597 = vmatpush1.msra.mxu0 0.0
    %598 = vmatprep.subr.mxu0 0.0
    %599 = vmatpush1.msra.mxu0 0.0
    %600 = vmatprep.subr.mxu0 0.0
    %601 = vmatpush1.msra.mxu0 0.0
    %602 = vmatprep.subr.mxu0 0.0
    %603 = vmatpush1.msra.mxu0 0.0
    %604 = vmatprep.mubr.f32.mxu0 0.0
    %605 = vmatmul.mubr.f32.gmra.mrb[0].mxu0 0.0
    %v606 = vpop.f32.mrb[0].mxu0
    %v607 = vadd.f32 0.0, %v606
    %v608 = vpop.f32.mrb[0].mxu0
    %v609 = vadd.f32 0.0, %v608
    %610 = vdwg.mxu0
    %611 = vmatprep.subr.mxu0 %v479
    %612 = vmatpush1.msra.mxu0 %v478
    %613 = vmatprep.subr.mxu0 %v483
    %614 = vmatpush1.msra.mxu0 %v482
    %615 = vmatprep.subr.mxu0 %v487
    %616 = vmatpush1.msra.mxu0 %v486
    %617 = vmatprep.subr.mxu0 %v491
    %618 = vmatpush1.msra.mxu0 %v490
    %619 = vmatprep.subr.mxu0 %v495
    %620 = vmatpush1.msra.mxu0 %v494
    %621 = vmatprep.subr.mxu0 %v499
    %622 = vmatpush1.msra.mxu0 %v498
    %623 = vmatprep.subr.mxu0 %v503
    %624 = vmatpush1.msra.mxu0 %v502
    %625 = vmatprep.subr.mxu0 %v507
    %626 = vmatpush1.msra.mxu0 %v506
    %627 = vmatprep.subr.mxu0 %v511
    %628 = vmatpush1.msra.mxu0 %v510
    %629 = vmatprep.subr.mxu0 %v515
    %630 = vmatpush1.msra.mxu0 %v514
    %631 = vmatprep.subr.mxu0 %v519
    %632 = vmatpush1.msra.mxu0 %v518
    %633 = vmatprep.subr.mxu0 %v523
    %634 = vmatpush1.msra.mxu0 %v522
    %635 = vmatprep.subr.mxu0 %v527
    %636 = vmatpush1.msra.mxu0 %v526
    %637 = vmatprep.subr.mxu0 %v531
    %638 = vmatpush1.msra.mxu0 %v530
    %639 = vmatprep.subr.mxu0 %v535
    %640 = vmatpush1.msra.mxu0 %v534
    %641 = vmatprep.subr.mxu0 %v539
    %642 = vmatpush1.msra.mxu0 %v538
    %643 = vmatprep.subr.mxu0 0.0
    %644 = vmatpush1.msra.mxu0 0.0
    %645 = vmatprep.subr.mxu0 0.0
    %646 = vmatpush1.msra.mxu0 0.0
    %647 = vmatprep.subr.mxu0 0.0
    %648 = vmatpush1.msra.mxu0 0.0
    %649 = vmatprep.subr.mxu0 0.0
    %650 = vmatpush1.msra.mxu0 0.0
    %651 = vmatprep.subr.mxu0 0.0
    %652 = vmatpush1.msra.mxu0 0.0
    %653 = vmatprep.subr.mxu0 0.0
    %654 = vmatpush1.msra.mxu0 0.0
    %655 = vmatprep.subr.mxu0 0.0
    %656 = vmatpush1.msra.mxu0 0.0
    %657 = vmatprep.subr.mxu0 0.0
    %658 = vmatpush1.msra.mxu0 0.0
    %659 = vmatprep.subr.mxu0 0.0
    %660 = vmatpush1.msra.mxu0 0.0
    %661 = vmatprep.subr.mxu0 0.0
    %662 = vmatpush1.msra.mxu0 0.0
    %663 = vmatprep.subr.mxu0 0.0
    %664 = vmatpush1.msra.mxu0 0.0
    %665 = vmatprep.subr.mxu0 0.0
    %666 = vmatpush1.msra.mxu0 0.0
    %667 = vmatprep.subr.mxu0 0.0
    %668 = vmatpush1.msra.mxu0 0.0
    %669 = vmatprep.subr.mxu0 0.0
    %670 = vmatpush1.msra.mxu0 0.0
    %671 = vmatprep.subr.mxu0 0.0
    %672 = vmatpush1.msra.mxu0 0.0
    %673 = vmatprep.subr.mxu0 0.0
    %674 = vmatpush1.msra.mxu0 0.0
    %675 = vmatprep.mubr.f32.mxu0 0.0
    %676 = vmatmul.mubr.f32.gmra.mrb[0].mxu0 0.0
    %v677 = vpop.f32.mrb[0].mxu0
    %v678 = vadd.f32 0.0, %v677
    %v679 = vpop.f32.mrb[0].mxu0
    %v680 = vadd.f32 0.0, %v679
    %681 = vdwg.mxu0
    %v682 = vadd.f32 %v317, %v607
    %v683 = vadd.f32 %v319, %v609
    %v684 = vadd.f32 %v430, %v678
    %v685 = vadd.f32 %v432, %v680
    %v686 = vxor.u32 %v682, 2147483648
    %v687 = vmul.f32 %v686, 1.442695
    %v688 = vpow.pop %v687
    %v689 = vadd.f32 %v688, 1.0
    %v690 = vrcp.pop %v689
    %v691 = vmul.f32 1.0, %v690
    %v692 = vxor.u32 %v683, 2147483648
    %v693 = vmul.f32 %v692, 1.442695
    %v694 = vpow.pop %v693
    %v695 = vadd.f32 %v694, 1.0
    %v696 = vrcp.pop %v695
    %v697 = vmul.f32 1.0, %v696
    %v698 = vtanh.pop %v684
    %v699 = vxor.u32 %v685, 2147483648
    %v700 = vmul.f32 %v699, 1.442695
    %v701 = vpow.pop %v700
    %v702 = vadd.f32 %v701, 1.0
    %v703 = vrcp.pop %v702
    %v704 = vmul.f32 1.0, %v703
    %v705 = vmul.f32 %v697, 0.0
    %v706 = vmul.f32 %v691, %v698
    %v707 = vadd.f32 %v705, %v706
    %v708 = vtanh.pop %v707
    %v709 = vmul.f32 %v704, %v708
    %710 = vmatprep.subr.mxu0 %v477
    %711 = vmatpush1.msra.mxu0 %v476
    %712 = vmatprep.subr.mxu0 %v481
    %713 = vmatpush1.msra.mxu0 %v480
    %714 = vmatprep.subr.mxu0 %v485
    %715 = vmatpush1.msra.mxu0 %v484
    %716 = vmatprep.subr.mxu0 %v489
    %717 = vmatpush1.msra.mxu0 %v488
    %718 = vmatprep.subr.mxu0 %v493
    %719 = vmatpush1.msra.mxu0 %v492
    %720 = vmatprep.subr.mxu0 %v497
    %721 = vmatpush1.msra.mxu0 %v496
    %722 = vmatprep.subr.mxu0 %v501
    %723 = vmatpush1.msra.mxu0 %v500
    %724 = vmatprep.subr.mxu0 %v505
    %725 = vmatpush1.msra.mxu0 %v504
    %726 = vmatprep.subr.mxu0 %v509
    %727 = vmatpush1.msra.mxu0 %v508
    %728 = vmatprep.subr.mxu0 %v513
    %729 = vmatpush1.msra.mxu0 %v512
    %730 = vmatprep.subr.mxu0 %v517
    %731 = vmatpush1.msra.mxu0 %v516
    %732 = vmatprep.subr.mxu0 %v521
    %733 = vmatpush1.msra.mxu0 %v520
    %734 = vmatprep.subr.mxu0 %v525
    %735 = vmatpush1.msra.mxu0 %v524
    %736 = vmatprep.subr.mxu0 %v529
    %737 = vmatpush1.msra.mxu0 %v528
    %738 = vmatprep.subr.mxu0 %v533
    %739 = vmatpush1.msra.mxu0 %v532
    %740 = vmatprep.subr.mxu0 %v537
    %741 = vmatpush1.msra.mxu0 %v536
    %742 = vmatprep.subr.mxu0 0.0
    %743 = vmatpush1.msra.mxu0 0.0
    %744 = vmatprep.subr.mxu0 0.0
    %745 = vmatpush1.msra.mxu0 0.0
    %746 = vmatprep.subr.mxu0 0.0
    %747 = vmatpush1.msra.mxu0 0.0
    %748 = vmatprep.subr.mxu0 0.0
    %749 = vmatpush1.msra.mxu0 0.0
    %750 = vmatprep.subr.mxu0 0.0
    %751 = vmatpush1.msra.mxu0 0.0
    %752 = vmatprep.subr.mxu0 0.0
    %753 = vmatpush1.msra.mxu0 0.0
    %754 = vmatprep.subr.mxu0 0.0
    %755 = vmatpush1.msra.mxu0 0.0
    %756 = vmatprep.subr.mxu0 0.0
    %757 = vmatpush1.msra.mxu0 0.0
    %758 = vmatprep.subr.mxu0 0.0
    %759 = vmatpush1.msra.mxu0 0.0
    %760 = vmatprep.subr.mxu0 0.0
    %761 = vmatpush1.msra.mxu0 0.0
    %762 = vmatprep.subr.mxu0 0.0
    %763 = vmatpush1.msra.mxu0 0.0
    %764 = vmatprep.subr.mxu0 0.0
    %765 = vmatpush1.msra.mxu0 0.0
    %766 = vmatprep.subr.mxu0 0.0
    %767 = vmatpush1.msra.mxu0 0.0
    %768 = vmatprep.subr.mxu0 0.0
    %769 = vmatpush1.msra.mxu0 0.0
    %770 = vmatprep.subr.mxu0 0.0
    %771 = vmatpush1.msra.mxu0 0.0
    %772 = vmatprep.subr.mxu0 0.0
    %773 = vmatpush1.msra.mxu0 0.0
    %774 = vmatprep.mubr.f32.mxu0 0.0
    %775 = vmatmul.mubr.f32.gmra.mrb[0].mxu0 %v709
    %v776 = vpop.f32.mrb[0].mxu0
    %v777 = vadd.f32 0.0, %v776
    %v778 = vpop.f32.mrb[0].mxu0
    %v779 = vadd.f32 0.0, %v778
    %780 = vdwg.mxu0
    %781 = vmatprep.subr.mxu0 %v479
    %782 = vmatpush1.msra.mxu0 %v478
    %783 = vmatprep.subr.mxu0 %v483
    %784 = vmatpush1.msra.mxu0 %v482
    %785 = vmatprep.subr.mxu0 %v487
    %786 = vmatpush1.msra.mxu0 %v486
    %787 = vmatprep.subr.mxu0 %v491
    %788 = vmatpush1.msra.mxu0 %v490
    %789 = vmatprep.subr.mxu0 %v495
    %790 = vmatpush1.msra.mxu0 %v494
    %791 = vmatprep.subr.mxu0 %v499
    %792 = vmatpush1.msra.mxu0 %v498
    %793 = vmatprep.subr.mxu0 %v503
    %794 = vmatpush1.msra.mxu0 %v502
    %795 = vmatprep.subr.mxu0 %v507
    %796 = vmatpush1.msra.mxu0 %v506
    %797 = vmatprep.subr.mxu0 %v511
    %798 = vmatpush1.msra.mxu0 %v510
    %799 = vmatprep.subr.mxu0 %v515
    %800 = vmatpush1.msra.mxu0 %v514
    %801 = vmatprep.subr.mxu0 %v519
    %802 = vmatpush1.msra.mxu0 %v518
    %803 = vmatprep.subr.mxu0 %v523
    %804 = vmatpush1.msra.mxu0 %v522
    %805 = vmatprep.subr.mxu0 %v527
    %806 = vmatpush1.msra.mxu0 %v526
    %807 = vmatprep.subr.mxu0 %v531
    %808 = vmatpush1.msra.mxu0 %v530
    %809 = vmatprep.subr.mxu0 %v535
    %810 = vmatpush1.msra.mxu0 %v534
    %811 = vmatprep.subr.mxu0 %v539
    %812 = vmatpush1.msra.mxu0 %v538
    %813 = vmatprep.subr.mxu0 0.0
    %814 = vmatpush1.msra.mxu0 0.0
    %815 = vmatprep.subr.mxu0 0.0
    %816 = vmatpush1.msra.mxu0 0.0
    %817 = vmatprep.subr.mxu0 0.0
    %818 = vmatpush1.msra.mxu0 0.0
    %819 = vmatprep.subr.mxu0 0.0
    %820 = vmatpush1.msra.mxu0 0.0
    %821 = vmatprep.subr.mxu0 0.0
    %822 = vmatpush1.msra.mxu0 0.0
    %823 = vmatprep.subr.mxu0 0.0
    %824 = vmatpush1.msra.mxu0 0.0
    %825 = vmatprep.subr.mxu0 0.0
    %826 = vmatpush1.msra.mxu0 0.0
    %827 = vmatprep.subr.mxu0 0.0
    %828 = vmatpush1.msra.mxu0 0.0
    %829 = vmatprep.subr.mxu0 0.0
    %830 = vmatpush1.msra.mxu0 0.0
    %831 = vmatprep.subr.mxu0 0.0
    %832 = vmatpush1.msra.mxu0 0.0
    %833 = vmatprep.subr.mxu0 0.0
    %834 = vmatpush1.msra.mxu0 0.0
    %835 = vmatprep.subr.mxu0 0.0
    %836 = vmatpush1.msra.mxu0 0.0
    %837 = vmatprep.subr.mxu0 0.0
    %838 = vmatpush1.msra.mxu0 0.0
    %839 = vmatprep.subr.mxu0 0.0
    %840 = vmatpush1.msra.mxu0 0.0
    %841 = vmatprep.subr.mxu0 0.0
    %842 = vmatpush1.msra.mxu0 0.0
    %843 = vmatprep.subr.mxu0 0.0
    %844 = vmatpush1.msra.mxu0 0.0
    %845 = vmatprep.mubr.f32.mxu0 0.0
    %846 = vmatmul.mubr.f32.gmra.mrb[0].mxu0 %v709
    %v847 = vpop.f32.mrb[0].mxu0
    %v848 = vadd.f32 0.0, %v847
    %v849 = vpop.f32.mrb[0].mxu0
    %v850 = vadd.f32 0.0, %v849
    %851 = vdwg.mxu0
    %v852 = vadd.f32 %v323, %v777
    %v853 = vadd.f32 %v325, %v779
    %v854 = vadd.f32 %v436, %v848
    %v855 = vadd.f32 %v438, %v850
    %v856 = vxor.u32 %v852, 2147483648
    %v857 = vmul.f32 %v856, 1.442695
    %v858 = vpow.pop %v857
    %v859 = vadd.f32 %v858, 1.0
    %v860 = vrcp.pop %v859
    %v861 = vmul.f32 1.0, %v860
    %v862 = vxor.u32 %v853, 2147483648
    %v863 = vmul.f32 %v862, 1.442695
    %v864 = vpow.pop %v863
    %v865 = vadd.f32 %v864, 1.0
    %v866 = vrcp.pop %v865
    %v867 = vmul.f32 1.0, %v866
    %v868 = vtanh.pop %v854
    %v869 = vxor.u32 %v855, 2147483648
    %v870 = vmul.f32 %v869, 1.442695
    %v871 = vpow.pop %v870
    %v872 = vadd.f32 %v871, 1.0
    %v873 = vrcp.pop %v872
    %v874 = vmul.f32 1.0, %v873
    %v875 = vmul.f32 %v867, %v707
    %v876 = vmul.f32 %v861, %v868
    %v877 = vadd.f32 %v875, %v876
    %v878 = vtanh.pop %v877
    %v879 = vmul.f32 %v874, %v878
    %880 = vmatprep.subr.mxu0 %v477
    %881 = vmatpush1.msra.mxu0 %v476
    %882 = vmatprep.subr.mxu0 %v481
    %883 = vmatpush1.msra.mxu0 %v480
    %884 = vmatprep.subr.mxu0 %v485
    %885 = vmatpush1.msra.mxu0 %v484
    %886 = vmatprep.subr.mxu0 %v489
    %887 = vmatpush1.msra.mxu0 %v488
    %888 = vmatprep.subr.mxu0 %v493
    %889 = vmatpush1.msra.mxu0 %v492
    %890 = vmatprep.subr.mxu0 %v497
    %891 = vmatpush1.msra.mxu0 %v496
    %892 = vmatprep.subr.mxu0 %v501
    %893 = vmatpush1.msra.mxu0 %v500
    %894 = vmatprep.subr.mxu0 %v505
    %895 = vmatpush1.msra.mxu0 %v504
    %896 = vmatprep.subr.mxu0 %v509
    %897 = vmatpush1.msra.mxu0 %v508
    %898 = vmatprep.subr.mxu0 %v513
    %899 = vmatpush1.msra.mxu0 %v512
    %900 = vmatprep.subr.mxu0 %v517
    %901 = vmatpush1.msra.mxu0 %v516
    %902 = vmatprep.subr.mxu0 %v521
    %903 = vmatpush1.msra.mxu0 %v520
    %904 = vmatprep.subr.mxu0 %v525
    %905 = vmatpush1.msra.mxu0 %v524
    %906 = vmatprep.subr.mxu0 %v529
    %907 = vmatpush1.msra.mxu0 %v528
    %908 = vmatprep.subr.mxu0 %v533
    %909 = vmatpush1.msra.mxu0 %v532
    %910 = vmatprep.subr.mxu0 %v537
    %911 = vmatpush1.msra.mxu0 %v536
    %912 = vmatprep.subr.mxu0 0.0
    %913 = vmatpush1.msra.mxu0 0.0
    %914 = vmatprep.subr.mxu0 0.0
    %915 = vmatpush1.msra.mxu0 0.0
    %916 = vmatprep.subr.mxu0 0.0
    %917 = vmatpush1.msra.mxu0 0.0
    %918 = vmatprep.subr.mxu0 0.0
    %919 = vmatpush1.msra.mxu0 0.0
    %920 = vmatprep.subr.mxu0 0.0
    %921 = vmatpush1.msra.mxu0 0.0
    %922 = vmatprep.subr.mxu0 0.0
    %923 = vmatpush1.msra.mxu0 0.0
    %924 = vmatprep.subr.mxu0 0.0
    %925 = vmatpush1.msra.mxu0 0.0
    %926 = vmatprep.subr.mxu0 0.0
    %927 = vmatpush1.msra.mxu0 0.0
    %928 = vmatprep.subr.mxu0 0.0
    %929 = vmatpush1.msra.mxu0 0.0
    %930 = vmatprep.subr.mxu0 0.0
    %931 = vmatpush1.msra.mxu0 0.0
    %932 = vmatprep.subr.mxu0 0.0
    %933 = vmatpush1.msra.mxu0 0.0
    %934 = vmatprep.subr.mxu0 0.0
    %935 = vmatpush1.msra.mxu0 0.0
    %936 = vmatprep.subr.mxu0 0.0
    %937 = vmatpush1.msra.mxu0 0.0
    %938 = vmatprep.subr.mxu0 0.0
    %939 = vmatpush1.msra.mxu0 0.0
    %940 = vmatprep.subr.mxu0 0.0
    %941 = vmatpush1.msra.mxu0 0.0
    %942 = vmatprep.subr.mxu0 0.0
    %943 = vmatpush1.msra.mxu0 0.0
    %944 = vmatprep.mubr.f32.mxu0 0.0
    %945 = vmatmul.mubr.f32.gmra.mrb[0].mxu0 %v879
    %v946 = vpop.f32.mrb[0].mxu0
    %v947 = vadd.f32 0.0, %v946
    %v948 = vpop.f32.mrb[0].mxu0
    %v949 = vadd.f32 0.0, %v948
    %950 = vdwg.mxu0
    %951 = vmatprep.subr.mxu0 %v479
    %952 = vmatpush1.msra.mxu0 %v478
    %953 = vmatprep.subr.mxu0 %v483
    %954 = vmatpush1.msra.mxu0 %v482
    %955 = vmatprep.subr.mxu0 %v487
    %956 = vmatpush1.msra.mxu0 %v486
    %957 = vmatprep.subr.mxu0 %v491
    %958 = vmatpush1.msra.mxu0 %v490
    %959 = vmatprep.subr.mxu0 %v495
    %960 = vmatpush1.msra.mxu0 %v494
    %961 = vmatprep.subr.mxu0 %v499
    %962 = vmatpush1.msra.mxu0 %v498
    %963 = vmatprep.subr.mxu0 %v503
    %964 = vmatpush1.msra.mxu0 %v502
    %965 = vmatprep.subr.mxu0 %v507
    %966 = vmatpush1.msra.mxu0 %v506
    %967 = vmatprep.subr.mxu0 %v511
    %968 = vmatpush1.msra.mxu0 %v510
    %969 = vmatprep.subr.mxu0 %v515
    %970 = vmatpush1.msra.mxu0 %v514
    %971 = vmatprep.subr.mxu0 %v519
    %972 = vmatpush1.msra.mxu0 %v518
    %973 = vmatprep.subr.mxu0 %v523
    %974 = vmatpush1.msra.mxu0 %v522
    %975 = vmatprep.subr.mxu0 %v527
    %976 = vmatpush1.msra.mxu0 %v526
    %977 = vmatprep.subr.mxu0 %v531
    %978 = vmatpush1.msra.mxu0 %v530
    %979 = vmatprep.subr.mxu0 %v535
    %980 = vmatpush1.msra.mxu0 %v534
    %981 = vmatprep.subr.mxu0 %v539
    %982 = vmatpush1.msra.mxu0 %v538
    %983 = vmatprep.subr.mxu0 0.0
    %984 = vmatpush1.msra.mxu0 0.0
    %985 = vmatprep.subr.mxu0 0.0
    %986 = vmatpush1.msra.mxu0 0.0
    %987 = vmatprep.subr.mxu0 0.0
    %988 = vmatpush1.msra.mxu0 0.0
    %989 = vmatprep.subr.mxu0 0.0
    %990 = vmatpush1.msra.mxu0 0.0
    %991 = vmatprep.subr.mxu0 0.0
    %992 = vmatpush1.msra.mxu0 0.0
    %993 = vmatprep.subr.mxu0 0.0
    %994 = vmatpush1.msra.mxu0 0.0
    %995 = vmatprep.subr.mxu0 0.0
    %996 = vmatpush1.msra.mxu0 0.0
    %997 = vmatprep.subr.mxu0 0.0
    %998 = vmatpush1.msra.mxu0 0.0
    %999 = vmatprep.subr.mxu0 0.0
    %1000 = vmatpush1.msra.mxu0 0.0
    %1001 = vmatprep.subr.mxu0 0.0
    %1002 = vmatpush1.msra.mxu0 0.0
    %1003 = vmatprep.subr.mxu0 0.0
    %1004 = vmatpush1.msra.mxu0 0.0
    %1005 = vmatprep.subr.mxu0 0.0
    %1006 = vmatpush1.msra.mxu0 0.0
    %1007 = vmatprep.subr.mxu0 0.0
    %1008 = vmatpush1.msra.mxu0 0.0
    %1009 = vmatprep.subr.mxu0 0.0
    %1010 = vmatpush1.msra.mxu0 0.0
    %1011 = vmatprep.subr.mxu0 0.0
    %1012 = vmatpush1.msra.mxu0 0.0
    %1013 = vmatprep.subr.mxu0 0.0
    %1014 = vmatpush1.msra.mxu0 0.0
    %1015 = vmatprep.mubr.f32.mxu0 0.0
    %1016 = vmatmul.mubr.f32.gmra.mrb[0].mxu0 %v879
    %v1017 = vpop.f32.mrb[0].mxu0
    %v1018 = vadd.f32 0.0, %v1017
    %v1019 = vpop.f32.mrb[0].mxu0
    %v1020 = vadd.f32 0.0, %v1019
    %1021 = vdwg.mxu0
    %v1022 = vadd.f32 %v329, %v947
    %v1023 = vadd.f32 %v331, %v949
    %v1024 = vadd.f32 %v442, %v1018
    %v1025 = vadd.f32 %v444, %v1020
    %v1026 = vxor.u32 %v1022, 2147483648
    %v1027 = vmul.f32 %v1026, 1.442695
    %v1028 = vpow.pop %v1027
    %v1029 = vadd.f32 %v1028, 1.0
    %v1030 = vrcp.pop %v1029
    %v1031 = vmul.f32 1.0, %v1030
    %v1032 = vxor.u32 %v1023, 2147483648
    %v1033 = vmul.f32 %v1032, 1.442695
    %v1034 = vpow.pop %v1033
    %v1035 = vadd.f32 %v1034, 1.0
    %v1036 = vrcp.pop %v1035
    %v1037 = vmul.f32 1.0, %v1036
    %v1038 = vtanh.pop %v1024
    %v1039 = vxor.u32 %v1025, 2147483648
    %v1040 = vmul.f32 %v1039, 1.442695
    %v1041 = vpow.pop %v1040
    %v1042 = vadd.f32 %v1041, 1.0
    %v1043 = vrcp.pop %v1042
    %v1044 = vmul.f32 1.0, %v1043
    %v1045 = vmul.f32 %v1037, %v877
    %v1046 = vmul.f32 %v1031, %v1038
    %v1047 = vadd.f32 %v1045, %v1046
    %v1048 = vtanh.pop %v1047
    %v1049 = vmul.f32 %v1044, %v1048
    %1050 = vmatprep.subr.mxu0 %v477
    %1051 = vmatpush1.msra.mxu0 %v476
    %1052 = vmatprep.subr.mxu0 %v481
    %1053 = vmatpush1.msra.mxu0 %v480
    %1054 = vmatprep.subr.mxu0 %v485
    %1055 = vmatpush1.msra.mxu0 %v484
    %1056 = vmatprep.subr.mxu0 %v489
    %1057 = vmatpush1.msra.mxu0 %v488
    %1058 = vmatprep.subr.mxu0 %v493
    %1059 = vmatpush1.msra.mxu0 %v492
    %1060 = vmatprep.subr.mxu0 %v497
    %1061 = vmatpush1.msra.mxu0 %v496
    %1062 = vmatprep.subr.mxu0 %v501
    %1063 = vmatpush1.msra.mxu0 %v500
    %1064 = vmatprep.subr.mxu0 %v505
    %1065 = vmatpush1.msra.mxu0 %v504
    %1066 = vmatprep.subr.mxu0 %v509
    %1067 = vmatpush1.msra.mxu0 %v508
    %1068 = vmatprep.subr.mxu0 %v513
    %1069 = vmatpush1.msra.mxu0 %v512
    %1070 = vmatprep.subr.mxu0 %v517
    %1071 = vmatpush1.msra.mxu0 %v516
    %1072 = vmatprep.subr.mxu0 %v521
    %1073 = vmatpush1.msra.mxu0 %v520
    %1074 = vmatprep.subr.mxu0 %v525
    %1075 = vmatpush1.msra.mxu0 %v524
    %1076 = vmatprep.subr.mxu0 %v529
    %1077 = vmatpush1.msra.mxu0 %v528
    %1078 = vmatprep.subr.mxu0 %v533
    %1079 = vmatpush1.msra.mxu0 %v532
    %1080 = vmatprep.subr.mxu0 %v537
    %1081 = vmatpush1.msra.mxu0 %v536
    %1082 = vmatprep.subr.mxu0 0.0
    %1083 = vmatpush1.msra.mxu0 0.0
    %1084 = vmatprep.subr.mxu0 0.0
    %1085 = vmatpush1.msra.mxu0 0.0
    %1086 = vmatprep.subr.mxu0 0.0
    %1087 = vmatpush1.msra.mxu0 0.0
    %1088 = vmatprep.subr.mxu0 0.0
    %1089 = vmatpush1.msra.mxu0 0.0
    %1090 = vmatprep.subr.mxu0 0.0
    %1091 = vmatpush1.msra.mxu0 0.0
    %1092 = vmatprep.subr.mxu0 0.0
    %1093 = vmatpush1.msra.mxu0 0.0
    %1094 = vmatprep.subr.mxu0 0.0
    %1095 = vmatpush1.msra.mxu0 0.0
    %1096 = vmatprep.subr.mxu0 0.0
    %1097 = vmatpush1.msra.mxu0 0.0
    %1098 = vmatprep.subr.mxu0 0.0
    %1099 = vmatpush1.msra.mxu0 0.0
    %1100 = vmatprep.subr.mxu0 0.0
    %1101 = vmatpush1.msra.mxu0 0.0
    %1102 = vmatprep.subr.mxu0 0.0
    %1103 = vmatpush1.msra.mxu0 0.0
    %1104 = vmatprep.subr.mxu0 0.0
    %1105 = vmatpush1.msra.mxu0 0.0
    %1106 = vmatprep.subr.mxu0 0.0
    %1107 = vmatpush1.msra.mxu0 0.0
    %1108 = vmatprep.subr.mxu0 0.0
    %1109 = vmatpush1.msra.mxu0 0.0
    %1110 = vmatprep.subr.mxu0 0.0
    %1111 = vmatpush1.msra.mxu0 0.0
    %1112 = vmatprep.subr.mxu0 0.0
    %1113 = vmatpush1.msra.mxu0 0.0
    %1114 = vmatprep.mubr.f32.mxu0 0.0
    %1115 = vmatmul.mubr.f32.gmra.mrb[0].mxu0 %v1049
    %v1116 = vpop.f32.mrb[0].mxu0
    %v1117 = vadd.f32 0.0, %v1116
    %v1118 = vpop.f32.mrb[0].mxu0
    %v1119 = vadd.f32 0.0, %v1118
    %1120 = vdwg.mxu0
    %1121 = vmatprep.subr.mxu0 %v479
    %1122 = vmatpush1.msra.mxu0 %v478
    %1123 = vmatprep.subr.mxu0 %v483
    %1124 = vmatpush1.msra.mxu0 %v482
    %1125 = vmatprep.subr.mxu0 %v487
    %1126 = vmatpush1.msra.mxu0 %v486
    %1127 = vmatprep.subr.mxu0 %v491
    %1128 = vmatpush1.msra.mxu0 %v490
    %1129 = vmatprep.subr.mxu0 %v495
    %1130 = vmatpush1.msra.mxu0 %v494
    %1131 = vmatprep.subr.mxu0 %v499
    %1132 = vmatpush1.msra.mxu0 %v498
    %1133 = vmatprep.subr.mxu0 %v503
    %1134 = vmatpush1.msra.mxu0 %v502
    %1135 = vmatprep.subr.mxu0 %v507
    %1136 = vmatpush1.msra.mxu0 %v506
    %1137 = vmatprep.subr.mxu0 %v511
    %1138 = vmatpush1.msra.mxu0 %v510
    %1139 = vmatprep.subr.mxu0 %v515
    %1140 = vmatpush1.msra.mxu0 %v514
    %1141 = vmatprep.subr.mxu0 %v519
    %1142 = vmatpush1.msra.mxu0 %v518
    %1143 = vmatprep.subr.mxu0 %v523
    %1144 = vmatpush1.msra.mxu0 %v522
    %1145 = vmatprep.subr.mxu0 %v527
    %1146 = vmatpush1.msra.mxu0 %v526
    %1147 = vmatprep.subr.mxu0 %v531
    %1148 = vmatpush1.msra.mxu0 %v530
    %1149 = vmatprep.subr.mxu0 %v535
    %1150 = vmatpush1.msra.mxu0 %v534
    %1151 = vmatprep.subr.mxu0 %v539
    %1152 = vmatpush1.msra.mxu0 %v538
    %1153 = vmatprep.subr.mxu0 0.0
    %1154 = vmatpush1.msra.mxu0 0.0
    %1155 = vmatprep.subr.mxu0 0.0
    %1156 = vmatpush1.msra.mxu0 0.0
    %1157 = vmatprep.subr.mxu0 0.0
    %1158 = vmatpush1.msra.mxu0 0.0
    %1159 = vmatprep.subr.mxu0 0.0
    %1160 = vmatpush1.msra.mxu0 0.0
    %1161 = vmatprep.subr.mxu0 0.0
    %1162 = vmatpush1.msra.mxu0 0.0
    %1163 = vmatprep.subr.mxu0 0.0
    %1164 = vmatpush1.msra.mxu0 0.0
    %1165 = vmatprep.subr.mxu0 0.0
    %1166 = vmatpush1.msra.mxu0 0.0
    %1167 = vmatprep.subr.mxu0 0.0
    %1168 = vmatpush1.msra.mxu0 0.0
    %1169 = vmatprep.subr.mxu0 0.0
    %1170 = vmatpush1.msra.mxu0 0.0
    %1171 = vmatprep.subr.mxu0 0.0
    %1172 = vmatpush1.msra.mxu0 0.0
    %1173 = vmatprep.subr.mxu0 0.0
    %1174 = vmatpush1.msra.mxu0 0.0
    %1175 = vmatprep.subr.mxu0 0.0
    %1176 = vmatpush1.msra.mxu0 0.0
    %1177 = vmatprep.subr.mxu0 0.0
    %1178 = vmatpush1.msra.mxu0 0.0
    %1179 = vmatprep.subr.mxu0 0.0
    %1180 = vmatpush1.msra.mxu0 0.0
    %1181 = vmatprep.subr.mxu0 0.0
    %1182 = vmatpush1.msra.mxu0 0.0
    %1183 = vmatprep.subr.mxu0 0.0
    %1184 = vmatpush1.msra.mxu0 0.0
    %1185 = vmatprep.mubr.f32.mxu0 0.0
    %1186 = vmatmul.mubr.f32.gmra.mrb[0].mxu0 %v1049
    %v1187 = vpop.f32.mrb[0].mxu0
    %v1188 = vadd.f32 0.0, %v1187
    %v1189 = vpop.f32.mrb[0].mxu0
    %v1190 = vadd.f32 0.0, %v1189
    %1191 = vdwg.mxu0
    %v1192 = vadd.f32 %v335, %v1117
    %v1193 = vadd.f32 %v337, %v1119
    %v1194 = vadd.f32 %v448, %v1188
    %v1195 = vadd.f32 %v450, %v1190
    %v1196 = vxor.u32 %v1192, 2147483648
    %v1197 = vmul.f32 %v1196, 1.442695
    %v1198 = vpow.pop %v1197
    %v1199 = vadd.f32 %v1198, 1.0
    %v1200 = vrcp.pop %v1199
    %v1201 = vmul.f32 1.0, %v1200
    %v1202 = vxor.u32 %v1193, 2147483648
    %v1203 = vmul.f32 %v1202, 1.442695
    %v1204 = vpow.pop %v1203
    %v1205 = vadd.f32 %v1204, 1.0
    %v1206 = vrcp.pop %v1205
    %v1207 = vmul.f32 1.0, %v1206
    %v1208 = vtanh.pop %v1194
    %v1209 = vxor.u32 %v1195, 2147483648
    %v1210 = vmul.f32 %v1209, 1.442695
    %v1211 = vpow.pop %v1210
    %v1212 = vadd.f32 %v1211, 1.0
    %v1213 = vrcp.pop %v1212
    %v1214 = vmul.f32 1.0, %v1213
    %v1215 = vmul.f32 %v1207, %v1047
    %v1216 = vmul.f32 %v1201, %v1208
    %v1217 = vadd.f32 %v1215, %v1216
    %v1218 = vtanh.pop %v1217
    %v1219 = vmul.f32 %v1214, %v1218
    %1220 = vmatprep.subr.mxu0 %v477
    %1221 = vmatpush1.msra.mxu0 %v476
    %1222 = vmatprep.subr.mxu0 %v481
    %1223 = vmatpush1.msra.mxu0 %v480
    %1224 = vmatprep.subr.mxu0 %v485
    %1225 = vmatpush1.msra.mxu0 %v484
    %1226 = vmatprep.subr.mxu0 %v489
    %1227 = vmatpush1.msra.mxu0 %v488
    %1228 = vmatprep.subr.mxu0 %v493
    %1229 = vmatpush1.msra.mxu0 %v492
    %1230 = vmatprep.subr.mxu0 %v497
    %1231 = vmatpush1.msra.mxu0 %v496
    %1232 = vmatprep.subr.mxu0 %v501
    %1233 = vmatpush1.msra.mxu0 %v500
    %1234 = vmatprep.subr.mxu0 %v505
    %1235 = vmatpush1.msra.mxu0 %v504
    %1236 = vmatprep.subr.mxu0 %v509
    %1237 = vmatpush1.msra.mxu0 %v508
    %1238 = vmatprep.subr.mxu0 %v513
    %1239 = vmatpush1.msra.mxu0 %v512
    %1240 = vmatprep.subr.mxu0 %v517
    %1241 = vmatpush1.msra.mxu0 %v516
    %1242 = vmatprep.subr.mxu0 %v521
    %1243 = vmatpush1.msra.mxu0 %v520
    %1244 = vmatprep.subr.mxu0 %v525
    %1245 = vmatpush1.msra.mxu0 %v524
    %1246 = vmatprep.subr.mxu0 %v529
    %1247 = vmatpush1.msra.mxu0 %v528
    %1248 = vmatprep.subr.mxu0 %v533
    %1249 = vmatpush1.msra.mxu0 %v532
    %1250 = vmatprep.subr.mxu0 %v537
    %1251 = vmatpush1.msra.mxu0 %v536
    %1252 = vmatprep.subr.mxu0 0.0
    %1253 = vmatpush1.msra.mxu0 0.0
    %1254 = vmatprep.subr.mxu0 0.0
    %1255 = vmatpush1.msra.mxu0 0.0
    %1256 = vmatprep.subr.mxu0 0.0
    %1257 = vmatpush1.msra.mxu0 0.0
    %1258 = vmatprep.subr.mxu0 0.0
    %1259 = vmatpush1.msra.mxu0 0.0
    %1260 = vmatprep.subr.mxu0 0.0
    %1261 = vmatpush1.msra.mxu0 0.0
    %1262 = vmatprep.subr.mxu0 0.0
    %1263 = vmatpush1.msra.mxu0 0.0
    %1264 = vmatprep.subr.mxu0 0.0
    %1265 = vmatpush1.msra.mxu0 0.0
    %1266 = vmatprep.subr.mxu0 0.0
    %1267 = vmatpush1.msra.mxu0 0.0
    %1268 = vmatprep.subr.mxu0 0.0
    %1269 = vmatpush1.msra.mxu0 0.0
    %1270 = vmatprep.subr.mxu0 0.0
    %1271 = vmatpush1.msra.mxu0 0.0
    %1272 = vmatprep.subr.mxu0 0.0
    %1273 = vmatpush1.msra.mxu0 0.0
    %1274 = vmatprep.subr.mxu0 0.0
    %1275 = vmatpush1.msra.mxu0 0.0
    %1276 = vmatprep.subr.mxu0 0.0
    %1277 = vmatpush1.msra.mxu0 0.0
    %1278 = vmatprep.subr.mxu0 0.0
    %1279 = vmatpush1.msra.mxu0 0.0
    %1280 = vmatprep.subr.mxu0 0.0
    %1281 = vmatpush1.msra.mxu0 0.0
    %1282 = vmatprep.subr.mxu0 0.0
    %1283 = vmatpush1.msra.mxu0 0.0
    %1284 = vmatprep.mubr.f32.mxu0 0.0
    %1285 = vmatmul.mubr.f32.gmra.mrb[0].mxu0 %v1219
    %v1286 = vpop.f32.mrb[0].mxu0
    %v1287 = vadd.f32 0.0, %v1286
    %v1288 = vpop.f32.mrb[0].mxu0
    %v1289 = vadd.f32 0.0, %v1288
    %1290 = vdwg.mxu0
    %1291 = vmatprep.subr.mxu0 %v479
    %1292 = vmatpush1.msra.mxu0 %v478
    %1293 = vmatprep.subr.mxu0 %v483
    %1294 = vmatpush1.msra.mxu0 %v482
    %1295 = vmatprep.subr.mxu0 %v487
    %1296 = vmatpush1.msra.mxu0 %v486
    %1297 = vmatprep.subr.mxu0 %v491
    %1298 = vmatpush1.msra.mxu0 %v490
    %1299 = vmatprep.subr.mxu0 %v495
    %1300 = vmatpush1.msra.mxu0 %v494
    %1301 = vmatprep.subr.mxu0 %v499
    %1302 = vmatpush1.msra.mxu0 %v498
    %1303 = vmatprep.subr.mxu0 %v503
    %1304 = vmatpush1.msra.mxu0 %v502
    %1305 = vmatprep.subr.mxu0 %v507
    %1306 = vmatpush1.msra.mxu0 %v506
    %1307 = vmatprep.subr.mxu0 %v511
    %1308 = vmatpush1.msra.mxu0 %v510
    %1309 = vmatprep.subr.mxu0 %v515
    %1310 = vmatpush1.msra.mxu0 %v514
    %1311 = vmatprep.subr.mxu0 %v519
    %1312 = vmatpush1.msra.mxu0 %v518
    %1313 = vmatprep.subr.mxu0 %v523
    %1314 = vmatpush1.msra.mxu0 %v522
    %1315 = vmatprep.subr.mxu0 %v527
    %1316 = vmatpush1.msra.mxu0 %v526
    %1317 = vmatprep.subr.mxu0 %v531
    %1318 = vmatpush1.msra.mxu0 %v530
    %1319 = vmatprep.subr.mxu0 %v535
    %1320 = vmatpush1.msra.mxu0 %v534
    %1321 = vmatprep.subr.mxu0 %v539
    %1322 = vmatpush1.msra.mxu0 %v538
    %1323 = vmatprep.subr.mxu0 0.0
    %1324 = vmatpush1.msra.mxu0 0.0
    %1325 = vmatprep.subr.mxu0 0.0
    %1326 = vmatpush1.msra.mxu0 0.0
    %1327 = vmatprep.subr.mxu0 0.0
    %1328 = vmatpush1.msra.mxu0 0.0
    %1329 = vmatprep.subr.mxu0 0.0
    %1330 = vmatpush1.msra.mxu0 0.0
    %1331 = vmatprep.subr.mxu0 0.0
    %1332 = vmatpush1.msra.mxu0 0.0
    %1333 = vmatprep.subr.mxu0 0.0
    %1334 = vmatpush1.msra.mxu0 0.0
    %1335 = vmatprep.subr.mxu0 0.0
    %1336 = vmatpush1.msra.mxu0 0.0
    %1337 = vmatprep.subr.mxu0 0.0
    %1338 = vmatpush1.msra.mxu0 0.0
    %1339 = vmatprep.subr.mxu0 0.0
    %1340 = vmatpush1.msra.mxu0 0.0
    %1341 = vmatprep.subr.mxu0 0.0
    %1342 = vmatpush1.msra.mxu0 0.0
    %1343 = vmatprep.subr.mxu0 0.0
    %1344 = vmatpush1.msra.mxu0 0.0
    %1345 = vmatprep.subr.mxu0 0.0
    %1346 = vmatpush1.msra.mxu0 0.0
    %1347 = vmatprep.subr.mxu0 0.0
    %1348 = vmatpush1.msra.mxu0 0.0
    %1349 = vmatprep.subr.mxu0 0.0
    %1350 = vmatpush1.msra.mxu0 0.0
    %1351 = vmatprep.subr.mxu0 0.0
    %1352 = vmatpush1.msra.mxu0 0.0
    %1353 = vmatprep.subr.mxu0 0.0
    %1354 = vmatpush1.msra.mxu0 0.0
    %1355 = vmatprep.mubr.f32.mxu0 0.0
    %1356 = vmatmul.mubr.f32.gmra.mrb[0].mxu0 %v1219
    %v1357 = vpop.f32.mrb[0].mxu0
    %v1358 = vadd.f32 0.0, %v1357
    %v1359 = vpop.f32.mrb[0].mxu0
    %v1360 = vadd.f32 0.0, %v1359
    %1361 = vdwg.mxu0
    %v1362 = vadd.f32 %v341, %v1287
    %v1363 = vadd.f32 %v343, %v1289
    %v1364 = vadd.f32 %v454, %v1358
    %v1365 = vadd.f32 %v456, %v1360
    %v1366 = vxor.u32 %v1362, 2147483648
    %v1367 = vmul.f32 %v1366, 1.442695
    %v1368 = vpow.pop %v1367
    %v1369 = vadd.f32 %v1368, 1.0
    %v1370 = vrcp.pop %v1369
    %v1371 = vmul.f32 1.0, %v1370
    %v1372 = vxor.u32 %v1363, 2147483648
    %v1373 = vmul.f32 %v1372, 1.442695
    %v1374 = vpow.pop %v1373
    %v1375 = vadd.f32 %v1374, 1.0
    %v1376 = vrcp.pop %v1375
    %v1377 = vmul.f32 1.0, %v1376
    %v1378 = vtanh.pop %v1364
    %v1379 = vxor.u32 %v1365, 2147483648
    %v1380 = vmul.f32 %v1379, 1.442695
    %v1381 = vpow.pop %v1380
    %v1382 = vadd.f32 %v1381, 1.0
    %v1383 = vrcp.pop %v1382
    %v1384 = vmul.f32 1.0, %v1383
    %v1385 = vmul.f32 %v1377, %v1217
    %v1386 = vmul.f32 %v1371, %v1378
    %v1387 = vadd.f32 %v1385, %v1386
    %v1388 = vtanh.pop %v1387
    %v1389 = vmul.f32 %v1384, %v1388
    %1390 = vmatprep.subr.mxu0 %v477
    %1391 = vmatpush1.msra.mxu0 %v476
    %1392 = vmatprep.subr.mxu0 %v481
    %1393 = vmatpush1.msra.mxu0 %v480
    %1394 = vmatprep.subr.mxu0 %v485
    %1395 = vmatpush1.msra.mxu0 %v484
    %1396 = vmatprep.subr.mxu0 %v489
    %1397 = vmatpush1.msra.mxu0 %v488
    %1398 = vmatprep.subr.mxu0 %v493
    %1399 = vmatpush1.msra.mxu0 %v492
    %1400 = vmatprep.subr.mxu0 %v497
    %1401 = vmatpush1.msra.mxu0 %v496
    %1402 = vmatprep.subr.mxu0 %v501
    %1403 = vmatpush1.msra.mxu0 %v500
    %1404 = vmatprep.subr.mxu0 %v505
    %1405 = vmatpush1.msra.mxu0 %v504
    %1406 = vmatprep.subr.mxu0 %v509
    %1407 = vmatpush1.msra.mxu0 %v508
    %1408 = vmatprep.subr.mxu0 %v513
    %1409 = vmatpush1.msra.mxu0 %v512
    %1410 = vmatprep.subr.mxu0 %v517
    %1411 = vmatpush1.msra.mxu0 %v516
    %1412 = vmatprep.subr.mxu0 %v521
    %1413 = vmatpush1.msra.mxu0 %v520
    %1414 = vmatprep.subr.mxu0 %v525
    %1415 = vmatpush1.msra.mxu0 %v524
    %1416 = vmatprep.subr.mxu0 %v529
    %1417 = vmatpush1.msra.mxu0 %v528
    %1418 = vmatprep.subr.mxu0 %v533
    %1419 = vmatpush1.msra.mxu0 %v532
    %1420 = vmatprep.subr.mxu0 %v537
    %1421 = vmatpush1.msra.mxu0 %v536
    %1422 = vmatprep.subr.mxu0 0.0
    %1423 = vmatpush1.msra.mxu0 0.0
    %1424 = vmatprep.subr.mxu0 0.0
    %1425 = vmatpush1.msra.mxu0 0.0
    %1426 = vmatprep.subr.mxu0 0.0
    %1427 = vmatpush1.msra.mxu0 0.0
    %1428 = vmatprep.subr.mxu0 0.0
    %1429 = vmatpush1.msra.mxu0 0.0
    %1430 = vmatprep.subr.mxu0 0.0
    %1431 = vmatpush1.msra.mxu0 0.0
    %1432 = vmatprep.subr.mxu0 0.0
    %1433 = vmatpush1.msra.mxu0 0.0
    %1434 = vmatprep.subr.mxu0 0.0
    %1435 = vmatpush1.msra.mxu0 0.0
    %1436 = vmatprep.subr.mxu0 0.0
    %1437 = vmatpush1.msra.mxu0 0.0
    %1438 = vmatprep.subr.mxu0 0.0
    %1439 = vmatpush1.msra.mxu0 0.0
    %1440 = vmatprep.subr.mxu0 0.0
    %1441 = vmatpush1.msra.mxu0 0.0
    %1442 = vmatprep.subr.mxu0 0.0
    %1443 = vmatpush1.msra.mxu0 0.0
    %1444 = vmatprep.subr.mxu0 0.0
    %1445 = vmatpush1.msra.mxu0 0.0
    %1446 = vmatprep.subr.mxu0 0.0
    %1447 = vmatpush1.msra.mxu0 0.0
    %1448 = vmatprep.subr.mxu0 0.0
    %1449 = vmatpush1.msra.mxu0 0.0
    %1450 = vmatprep.subr.mxu0 0.0
    %1451 = vmatpush1.msra.mxu0 0.0
    %1452 = vmatprep.subr.mxu0 0.0
    %1453 = vmatpush1.msra.mxu0 0.0
    %1454 = vmatprep.mubr.f32.mxu0 0.0
    %1455 = vmatmul.mubr.f32.gmra.mrb[0].mxu0 %v1389
    %v1456 = vpop.f32.mrb[0].mxu0
    %v1457 = vadd.f32 0.0, %v1456
    %v1458 = vpop.f32.mrb[0].mxu0
    %v1459 = vadd.f32 0.0, %v1458
    %1460 = vdwg.mxu0
    %1461 = vmatprep.subr.mxu0 %v479
    %1462 = vmatpush1.msra.mxu0 %v478
    %1463 = vmatprep.subr.mxu0 %v483
    %1464 = vmatpush1.msra.mxu0 %v482
    %1465 = vmatprep.subr.mxu0 %v487
    %1466 = vmatpush1.msra.mxu0 %v486
    %1467 = vmatprep.subr.mxu0 %v491
    %1468 = vmatpush1.msra.mxu0 %v490
    %1469 = vmatprep.subr.mxu0 %v495
    %1470 = vmatpush1.msra.mxu0 %v494
    %1471 = vmatprep.subr.mxu0 %v499
    %1472 = vmatpush1.msra.mxu0 %v498
    %1473 = vmatprep.subr.mxu0 %v503
    %1474 = vmatpush1.msra.mxu0 %v502
    %1475 = vmatprep.subr.mxu0 %v507
    %1476 = vmatpush1.msra.mxu0 %v506
    %1477 = vmatprep.subr.mxu0 %v511
    %1478 = vmatpush1.msra.mxu0 %v510
    %1479 = vmatprep.subr.mxu0 %v515
    %1480 = vmatpush1.msra.mxu0 %v514
    %1481 = vmatprep.subr.mxu0 %v519
    %1482 = vmatpush1.msra.mxu0 %v518
    %1483 = vmatprep.subr.mxu0 %v523
    %1484 = vmatpush1.msra.mxu0 %v522
    %1485 = vmatprep.subr.mxu0 %v527
    %1486 = vmatpush1.msra.mxu0 %v526
    %1487 = vmatprep.subr.mxu0 %v531
    %1488 = vmatpush1.msra.mxu0 %v530
    %1489 = vmatprep.subr.mxu0 %v535
    %1490 = vmatpush1.msra.mxu0 %v534
    %1491 = vmatprep.subr.mxu0 %v539
    %1492 = vmatpush1.msra.mxu0 %v538
    %1493 = vmatprep.subr.mxu0 0.0
    %1494 = vmatpush1.msra.mxu0 0.0
    %1495 = vmatprep.subr.mxu0 0.0
    %1496 = vmatpush1.msra.mxu0 0.0
    %1497 = vmatprep.subr.mxu0 0.0
    %1498 = vmatpush1.msra.mxu0 0.0
    %1499 = vmatprep.subr.mxu0 0.0
    %1500 = vmatpush1.msra.mxu0 0.0
    %1501 = vmatprep.subr.mxu0 0.0
    %1502 = vmatpush1.msra.mxu0 0.0
    %1503 = vmatprep.subr.mxu0 0.0
    %1504 = vmatpush1.msra.mxu0 0.0
    %1505 = vmatprep.subr.mxu0 0.0
    %1506 = vmatpush1.msra.mxu0 0.0
    %1507 = vmatprep.subr.mxu0 0.0
    %1508 = vmatpush1.msra.mxu0 0.0
    %1509 = vmatprep.subr.mxu0 0.0
    %1510 = vmatpush1.msra.mxu0 0.0
    %1511 = vmatprep.subr.mxu0 0.0
    %1512 = vmatpush1.msra.mxu0 0.0
    %1513 = vmatprep.subr.mxu0 0.0
    %1514 = vmatpush1.msra.mxu0 0.0
    %1515 = vmatprep.subr.mxu0 0.0
    %1516 = vmatpush1.msra.mxu0 0.0
    %1517 = vmatprep.subr.mxu0 0.0
    %1518 = vmatpush1.msra.mxu0 0.0
    %1519 = vmatprep.subr.mxu0 0.0
    %1520 = vmatpush1.msra.mxu0 0.0
    %1521 = vmatprep.subr.mxu0 0.0
    %1522 = vmatpush1.msra.mxu0 0.0
    %1523 = vmatprep.subr.mxu0 0.0
    %1524 = vmatpush1.msra.mxu0 0.0
    %1525 = vmatprep.mubr.f32.mxu0 0.0
    %1526 = vmatmul.mubr.f32.gmra.mrb[0].mxu0 %v1389
    %v1527 = vpop.f32.mrb[0].mxu0
    %v1528 = vadd.f32 0.0, %v1527
    %v1529 = vpop.f32.mrb[0].mxu0
    %v1530 = vadd.f32 0.0, %v1529
    %1531 = vdwg.mxu0
    %v1532 = vadd.f32 %v347, %v1457
    %v1533 = vadd.f32 %v349, %v1459
    %v1534 = vadd.f32 %v460, %v1528
    %v1535 = vadd.f32 %v462, %v1530
    %v1536 = vxor.u32 %v1532, 2147483648
    %v1537 = vmul.f32 %v1536, 1.442695
    %v1538 = vpow.pop %v1537
    %v1539 = vadd.f32 %v1538, 1.0
    %v1540 = vrcp.pop %v1539
    %v1541 = vmul.f32 1.0, %v1540
    %v1542 = vxor.u32 %v1533, 2147483648
    %v1543 = vmul.f32 %v1542, 1.442695
    %v1544 = vpow.pop %v1543
    %v1545 = vadd.f32 %v1544, 1.0
    %v1546 = vrcp.pop %v1545
    %v1547 = vmul.f32 1.0, %v1546
    %v1548 = vtanh.pop %v1534
    %v1549 = vxor.u32 %v1535, 2147483648
    %v1550 = vmul.f32 %v1549, 1.442695
    %v1551 = vpow.pop %v1550
    %v1552 = vadd.f32 %v1551, 1.0
    %v1553 = vrcp.pop %v1552
    %v1554 = vmul.f32 1.0, %v1553
    %v1555 = vmul.f32 %v1547, %v1387
    %v1556 = vmul.f32 %v1541, %v1548
    %v1557 = vadd.f32 %v1555, %v1556
    %v1558 = vtanh.pop %v1557
    %v1559 = vmul.f32 %v1554, %v1558
    %1560 = vmatprep.subr.mxu0 %v477
    %1561 = vmatpush1.msra.mxu0 %v476
    %1562 = vmatprep.subr.mxu0 %v481
    %1563 = vmatpush1.msra.mxu0 %v480
    %1564 = vmatprep.subr.mxu0 %v485
    %1565 = vmatpush1.msra.mxu0 %v484
    %1566 = vmatprep.subr.mxu0 %v489
    %1567 = vmatpush1.msra.mxu0 %v488
    %1568 = vmatprep.subr.mxu0 %v493
    %1569 = vmatpush1.msra.mxu0 %v492
    %1570 = vmatprep.subr.mxu0 %v497
    %1571 = vmatpush1.msra.mxu0 %v496
    %1572 = vmatprep.subr.mxu0 %v501
    %1573 = vmatpush1.msra.mxu0 %v500
    %1574 = vmatprep.subr.mxu0 %v505
    %1575 = vmatpush1.msra.mxu0 %v504
    %1576 = vmatprep.subr.mxu0 %v509
    %1577 = vmatpush1.msra.mxu0 %v508
    %1578 = vmatprep.subr.mxu0 %v513
    %1579 = vmatpush1.msra.mxu0 %v512
    %1580 = vmatprep.subr.mxu0 %v517
    %1581 = vmatpush1.msra.mxu0 %v516
    %1582 = vmatprep.subr.mxu0 %v521
    %1583 = vmatpush1.msra.mxu0 %v520
    %1584 = vmatprep.subr.mxu0 %v525
    %1585 = vmatpush1.msra.mxu0 %v524
    %1586 = vmatprep.subr.mxu0 %v529
    %1587 = vmatpush1.msra.mxu0 %v528
    %1588 = vmatprep.subr.mxu0 %v533
    %1589 = vmatpush1.msra.mxu0 %v532
    %1590 = vmatprep.subr.mxu0 %v537
    %1591 = vmatpush1.msra.mxu0 %v536
    %1592 = vmatprep.subr.mxu0 0.0
    %1593 = vmatpush1.msra.mxu0 0.0
    %1594 = vmatprep.subr.mxu0 0.0
    %1595 = vmatpush1.msra.mxu0 0.0
    %1596 = vmatprep.subr.mxu0 0.0
    %1597 = vmatpush1.msra.mxu0 0.0
    %1598 = vmatprep.subr.mxu0 0.0
    %1599 = vmatpush1.msra.mxu0 0.0
    %1600 = vmatprep.subr.mxu0 0.0
    %1601 = vmatpush1.msra.mxu0 0.0
    %1602 = vmatprep.subr.mxu0 0.0
    %1603 = vmatpush1.msra.mxu0 0.0
    %1604 = vmatprep.subr.mxu0 0.0
    %1605 = vmatpush1.msra.mxu0 0.0
    %1606 = vmatprep.subr.mxu0 0.0
    %1607 = vmatpush1.msra.mxu0 0.0
    %1608 = vmatprep.subr.mxu0 0.0
    %1609 = vmatpush1.msra.mxu0 0.0
    %1610 = vmatprep.subr.mxu0 0.0
    %1611 = vmatpush1.msra.mxu0 0.0
    %1612 = vmatprep.subr.mxu0 0.0
    %1613 = vmatpush1.msra.mxu0 0.0
    %1614 = vmatprep.subr.mxu0 0.0
    %1615 = vmatpush1.msra.mxu0 0.0
    %1616 = vmatprep.subr.mxu0 0.0
    %1617 = vmatpush1.msra.mxu0 0.0
    %1618 = vmatprep.subr.mxu0 0.0
    %1619 = vmatpush1.msra.mxu0 0.0
    %1620 = vmatprep.subr.mxu0 0.0
    %1621 = vmatpush1.msra.mxu0 0.0
    %1622 = vmatprep.subr.mxu0 0.0
    %1623 = vmatpush1.msra.mxu0 0.0
    %1624 = vmatprep.mubr.f32.mxu0 0.0
    %1625 = vmatmul.mubr.f32.gmra.mrb[0].mxu0 %v1559
    %v1626 = vpop.f32.mrb[0].mxu0
    %v1627 = vadd.f32 0.0, %v1626
    %v1628 = vpop.f32.mrb[0].mxu0
    %v1629 = vadd.f32 0.0, %v1628
    %1630 = vdwg.mxu0
    %1631 = vmatprep.subr.mxu0 %v479
    %1632 = vmatpush1.msra.mxu0 %v478
    %1633 = vmatprep.subr.mxu0 %v483
    %1634 = vmatpush1.msra.mxu0 %v482
    %1635 = vmatprep.subr.mxu0 %v487
    %1636 = vmatpush1.msra.mxu0 %v486
    %1637 = vmatprep.subr.mxu0 %v491
    %1638 = vmatpush1.msra.mxu0 %v490
    %1639 = vmatprep.subr.mxu0 %v495
    %1640 = vmatpush1.msra.mxu0 %v494
    %1641 = vmatprep.subr.mxu0 %v499
    %1642 = vmatpush1.msra.mxu0 %v498
    %1643 = vmatprep.subr.mxu0 %v503
    %1644 = vmatpush1.msra.mxu0 %v502
    %1645 = vmatprep.subr.mxu0 %v507
    %1646 = vmatpush1.msra.mxu0 %v506
    %1647 = vmatprep.subr.mxu0 %v511
    %1648 = vmatpush1.msra.mxu0 %v510
    %1649 = vmatprep.subr.mxu0 %v515
    %1650 = vmatpush1.msra.mxu0 %v514
    %1651 = vmatprep.subr.mxu0 %v519
    %1652 = vmatpush1.msra.mxu0 %v518
    %1653 = vmatprep.subr.mxu0 %v523
    %1654 = vmatpush1.msra.mxu0 %v522
    %1655 = vmatprep.subr.mxu0 %v527
    %1656 = vmatpush1.msra.mxu0 %v526
    %1657 = vmatprep.subr.mxu0 %v531
    %1658 = vmatpush1.msra.mxu0 %v530
    %1659 = vmatprep.subr.mxu0 %v535
    %1660 = vmatpush1.msra.mxu0 %v534
    %1661 = vmatprep.subr.mxu0 %v539
    %1662 = vmatpush1.msra.mxu0 %v538
    %1663 = vmatprep.subr.mxu0 0.0
    %1664 = vmatpush1.msra.mxu0 0.0
    %1665 = vmatprep.subr.mxu0 0.0
    %1666 = vmatpush1.msra.mxu0 0.0
    %1667 = vmatprep.subr.mxu0 0.0
    %1668 = vmatpush1.msra.mxu0 0.0
    %1669 = vmatprep.subr.mxu0 0.0
    %1670 = vmatpush1.msra.mxu0 0.0
    %1671 = vmatprep.subr.mxu0 0.0
    %1672 = vmatpush1.msra.mxu0 0.0
    %1673 = vmatprep.subr.mxu0 0.0
    %1674 = vmatpush1.msra.mxu0 0.0
    %1675 = vmatprep.subr.mxu0 0.0
    %1676 = vmatpush1.msra.mxu0 0.0
    %1677 = vmatprep.subr.mxu0 0.0
    %1678 = vmatpush1.msra.mxu0 0.0
    %1679 = vmatprep.subr.mxu0 0.0
    %1680 = vmatpush1.msra.mxu0 0.0
    %1681 = vmatprep.subr.mxu0 0.0
    %1682 = vmatpush1.msra.mxu0 0.0
    %1683 = vmatprep.subr.mxu0 0.0
    %1684 = vmatpush1.msra.mxu0 0.0
    %1685 = vmatprep.subr.mxu0 0.0
    %1686 = vmatpush1.msra.mxu0 0.0
    %1687 = vmatprep.subr.mxu0 0.0
    %1688 = vmatpush1.msra.mxu0 0.0
    %1689 = vmatprep.subr.mxu0 0.0
    %1690 = vmatpush1.msra.mxu0 0.0
    %1691 = vmatprep.subr.mxu0 0.0
    %1692 = vmatpush1.msra.mxu0 0.0
    %1693 = vmatprep.subr.mxu0 0.0
    %1694 = vmatpush1.msra.mxu0 0.0
    %1695 = vmatprep.mubr.f32.mxu0 0.0
    %1696 = vmatmul.mubr.f32.gmra.mrb[0].mxu0 %v1559
    %v1697 = vpop.f32.mrb[0].mxu0
    %v1698 = vadd.f32 0.0, %v1697
    %v1699 = vpop.f32.mrb[0].mxu0
    %v1700 = vadd.f32 0.0, %v1699
    %1701 = vdwg.mxu0
    %v1702 = vadd.f32 %v353, %v1627
    %v1703 = vadd.f32 %v355, %v1629
    %v1704 = vadd.f32 %v466, %v1698
    %v1705 = vadd.f32 %v468, %v1700
    %v1706 = vxor.u32 %v1702, 2147483648
    %v1707 = vmul.f32 %v1706, 1.442695
    %v1708 = vpow.pop %v1707
    %v1709 = vadd.f32 %v1708, 1.0
    %v1710 = vrcp.pop %v1709
    %v1711 = vmul.f32 1.0, %v1710
    %v1712 = vxor.u32 %v1703, 2147483648
    %v1713 = vmul.f32 %v1712, 1.442695
    %v1714 = vpow.pop %v1713
    %v1715 = vadd.f32 %v1714, 1.0
    %v1716 = vrcp.pop %v1715
    %v1717 = vmul.f32 1.0, %v1716
    %v1718 = vtanh.pop %v1704
    %v1719 = vxor.u32 %v1705, 2147483648
    %v1720 = vmul.f32 %v1719, 1.442695
    %v1721 = vpow.pop %v1720
    %v1722 = vadd.f32 %v1721, 1.0
    %v1723 = vrcp.pop %v1722
    %v1724 = vmul.f32 1.0, %v1723
    %v1725 = vmul.f32 %v1717, %v1557
    %v1726 = vmul.f32 %v1711, %v1718
    %v1727 = vadd.f32 %v1725, %v1726
    %v1728 = vtanh.pop %v1727
    %v1729 = vmul.f32 %v1724, %v1728
    %1730 = vmatprep.subr.mxu0 %v477
    %1731 = vmatpush1.msra.mxu0 %v476
    %1732 = vmatprep.subr.mxu0 %v481
    %1733 = vmatpush1.msra.mxu0 %v480
    %1734 = vmatprep.subr.mxu0 %v485
    %1735 = vmatpush1.msra.mxu0 %v484
    %1736 = vmatprep.subr.mxu0 %v489
    %1737 = vmatpush1.msra.mxu0 %v488
    %1738 = vmatprep.subr.mxu0 %v493
    %1739 = vmatpush1.msra.mxu0 %v492
    %1740 = vmatprep.subr.mxu0 %v497
    %1741 = vmatpush1.msra.mxu0 %v496
    %1742 = vmatprep.subr.mxu0 %v501
    %1743 = vmatpush1.msra.mxu0 %v500
    %1744 = vmatprep.subr.mxu0 %v505
    %1745 = vmatpush1.msra.mxu0 %v504
    %1746 = vmatprep.subr.mxu0 %v509
    %1747 = vmatpush1.msra.mxu0 %v508
    %1748 = vmatprep.subr.mxu0 %v513
    %1749 = vmatpush1.msra.mxu0 %v512
    %1750 = vmatprep.subr.mxu0 %v517
    %1751 = vmatpush1.msra.mxu0 %v516
    %1752 = vmatprep.subr.mxu0 %v521
    %1753 = vmatpush1.msra.mxu0 %v520
    %1754 = vmatprep.subr.mxu0 %v525
    %1755 = vmatpush1.msra.mxu0 %v524
    %1756 = vmatprep.subr.mxu0 %v529
    %1757 = vmatpush1.msra.mxu0 %v528
    %1758 = vmatprep.subr.mxu0 %v533
    %1759 = vmatpush1.msra.mxu0 %v532
    %1760 = vmatprep.subr.mxu0 %v537
    %1761 = vmatpush1.msra.mxu0 %v536
    %1762 = vmatprep.subr.mxu0 0.0
    %1763 = vmatpush1.msra.mxu0 0.0
    %1764 = vmatprep.subr.mxu0 0.0
    %1765 = vmatpush1.msra.mxu0 0.0
    %1766 = vmatprep.subr.mxu0 0.0
    %1767 = vmatpush1.msra.mxu0 0.0
    %1768 = vmatprep.subr.mxu0 0.0
    %1769 = vmatpush1.msra.mxu0 0.0
    %1770 = vmatprep.subr.mxu0 0.0
    %1771 = vmatpush1.msra.mxu0 0.0
    %1772 = vmatprep.subr.mxu0 0.0
    %1773 = vmatpush1.msra.mxu0 0.0
    %1774 = vmatprep.subr.mxu0 0.0
    %1775 = vmatpush1.msra.mxu0 0.0
    %1776 = vmatprep.subr.mxu0 0.0
    %1777 = vmatpush1.msra.mxu0 0.0
    %1778 = vmatprep.subr.mxu0 0.0
    %1779 = vmatpush1.msra.mxu0 0.0
    %1780 = vmatprep.subr.mxu0 0.0
    %1781 = vmatpush1.msra.mxu0 0.0
    %1782 = vmatprep.subr.mxu0 0.0
    %1783 = vmatpush1.msra.mxu0 0.0
    %1784 = vmatprep.subr.mxu0 0.0
    %1785 = vmatpush1.msra.mxu0 0.0
    %1786 = vmatprep.subr.mxu0 0.0
    %1787 = vmatpush1.msra.mxu0 0.0
    %1788 = vmatprep.subr.mxu0 0.0
    %1789 = vmatpush1.msra.mxu0 0.0
    %1790 = vmatprep.subr.mxu0 0.0
    %1791 = vmatpush1.msra.mxu0 0.0
    %1792 = vmatprep.subr.mxu0 0.0
    %1793 = vmatpush1.msra.mxu0 0.0
    %1794 = vmatprep.mubr.f32.mxu0 0.0
    %1795 = vmatmul.mubr.f32.gmra.mrb[0].mxu0 %v1729
    %v1796 = vpop.f32.mrb[0].mxu0
    %v1797 = vadd.f32 0.0, %v1796
    %v1798 = vpop.f32.mrb[0].mxu0
    %v1799 = vadd.f32 0.0, %v1798
    %1800 = vdwg.mxu0
    %1801 = vmatprep.subr.mxu0 %v479
    %1802 = vmatpush1.msra.mxu0 %v478
    %1803 = vmatprep.subr.mxu0 %v483
    %1804 = vmatpush1.msra.mxu0 %v482
    %1805 = vmatprep.subr.mxu0 %v487
    %1806 = vmatpush1.msra.mxu0 %v486
    %1807 = vmatprep.subr.mxu0 %v491
    %1808 = vmatpush1.msra.mxu0 %v490
    %1809 = vmatprep.subr.mxu0 %v495
    %1810 = vmatpush1.msra.mxu0 %v494
    %1811 = vmatprep.subr.mxu0 %v499
    %1812 = vmatpush1.msra.mxu0 %v498
    %1813 = vmatprep.subr.mxu0 %v503
    %1814 = vmatpush1.msra.mxu0 %v502
    %1815 = vmatprep.subr.mxu0 %v507
    %1816 = vmatpush1.msra.mxu0 %v506
    %1817 = vmatprep.subr.mxu0 %v511
    %1818 = vmatpush1.msra.mxu0 %v510
    %1819 = vmatprep.subr.mxu0 %v515
    %1820 = vmatpush1.msra.mxu0 %v514
    %1821 = vmatprep.subr.mxu0 %v519
    %1822 = vmatpush1.msra.mxu0 %v518
    %1823 = vmatprep.subr.mxu0 %v523
    %1824 = vmatpush1.msra.mxu0 %v522
    %1825 = vmatprep.subr.mxu0 %v527
    %1826 = vmatpush1.msra.mxu0 %v526
    %1827 = vmatprep.subr.mxu0 %v531
    %1828 = vmatpush1.msra.mxu0 %v530
    %1829 = vmatprep.subr.mxu0 %v535
    %1830 = vmatpush1.msra.mxu0 %v534
    %1831 = vmatprep.subr.mxu0 %v539
    %1832 = vmatpush1.msra.mxu0 %v538
    %1833 = vmatprep.subr.mxu0 0.0
    %1834 = vmatpush1.msra.mxu0 0.0
    %1835 = vmatprep.subr.mxu0 0.0
    %1836 = vmatpush1.msra.mxu0 0.0
    %1837 = vmatprep.subr.mxu0 0.0
    %1838 = vmatpush1.msra.mxu0 0.0
    %1839 = vmatprep.subr.mxu0 0.0
    %1840 = vmatpush1.msra.mxu0 0.0
    %1841 = vmatprep.subr.mxu0 0.0
    %1842 = vmatpush1.msra.mxu0 0.0
    %1843 = vmatprep.subr.mxu0 0.0
    %1844 = vmatpush1.msra.mxu0 0.0
    %1845 = vmatprep.subr.mxu0 0.0
    %1846 = vmatpush1.msra.mxu0 0.0
    %1847 = vmatprep.subr.mxu0 0.0
    %1848 = vmatpush1.msra.mxu0 0.0
    %1849 = vmatprep.subr.mxu0 0.0
    %1850 = vmatpush1.msra.mxu0 0.0
    %1851 = vmatprep.subr.mxu0 0.0
    %1852 = vmatpush1.msra.mxu0 0.0
    %1853 = vmatprep.subr.mxu0 0.0
    %1854 = vmatpush1.msra.mxu0 0.0
    %1855 = vmatprep.subr.mxu0 0.0
    %1856 = vmatpush1.msra.mxu0 0.0
    %1857 = vmatprep.subr.mxu0 0.0
    %1858 = vmatpush1.msra.mxu0 0.0
    %1859 = vmatprep.subr.mxu0 0.0
    %1860 = vmatpush1.msra.mxu0 0.0
    %1861 = vmatprep.subr.mxu0 0.0
    %1862 = vmatpush1.msra.mxu0 0.0
    %1863 = vmatprep.subr.mxu0 0.0
    %1864 = vmatpush1.msra.mxu0 0.0
    %1865 = vmatprep.mubr.f32.mxu0 0.0
    %1866 = vmatmul.mubr.f32.gmra.mrb[0].mxu0 %v1729
    %v1867 = vpop.f32.mrb[0].mxu0
    %v1868 = vadd.f32 0.0, %v1867
    %v1869 = vpop.f32.mrb[0].mxu0
    %v1870 = vadd.f32 0.0, %v1869
    %1871 = vdwg.mxu0
    %v1872 = vadd.f32 %v359, %v1797
    %v1873 = vadd.f32 %v361, %v1799
    %v1874 = vadd.f32 %v472, %v1868
    %v1875 = vadd.f32 %v474, %v1870
    %v1876 = vxor.u32 %v1872, 2147483648
    %v1877 = vmul.f32 %v1876, 1.442695
    %v1878 = vpow.pop %v1877
    %v1879 = vadd.f32 %v1878, 1.0
    %v1880 = vrcp.pop %v1879
    %v1881 = vmul.f32 1.0, %v1880
    %v1882 = vxor.u32 %v1873, 2147483648
    %v1883 = vmul.f32 %v1882, 1.442695
    %v1884 = vpow.pop %v1883
    %v1885 = vadd.f32 %v1884, 1.0
    %v1886 = vrcp.pop %v1885
    %v1887 = vmul.f32 1.0, %v1886
    %v1888 = vtanh.pop %v1874
    %v1889 = vxor.u32 %v1875, 2147483648
    %v1890 = vmul.f32 %v1889, 1.442695
    %v1891 = vpow.pop %v1890
    %v1892 = vadd.f32 %v1891, 1.0
    %v1893 = vrcp.pop %v1892
    %v1894 = vmul.f32 1.0, %v1893
    %v1895 = vmul.f32 %v1887, %v1727
    %v1896 = vmul.f32 %v1881, %v1888
    %v1897 = vadd.f32 %v1895, %v1896
    %v1898 = vtanh.pop %v1897
    %v1899 = vmul.f32 %v1894, %v1898
    %v1900 = vld [vmem:[#allocation11] sm:$0xff]
    %v1901 = vld [vmem:[#allocation11 + $0x8] sm:$0xff]
    %v1902 = vld [vmem:[#allocation11 + $0x10] sm:$0xff]
    %v1903 = vld [vmem:[#allocation11 + $0x18] sm:$0xff]
    %v1904 = vld [vmem:[#allocation11 + $0x20] sm:$0xff]
    %v1905 = vld [vmem:[#allocation11 + $0x28] sm:$0xff]
    %v1906 = vld [vmem:[#allocation11 + $0x30] sm:$0xff]
    %v1907 = vld [vmem:[#allocation11 + $0x38] sm:$0xff]
    %v1908 = vld [vmem:[#allocation11 + $0x40] sm:$0xff]
    %v1909 = vld [vmem:[#allocation11 + $0x48] sm:$0xff]
    %v1910 = vld [vmem:[#allocation11 + $0x50] sm:$0xff]
    %v1911 = vld [vmem:[#allocation11 + $0x58] sm:$0xff]
    %v1912 = vld [vmem:[#allocation11 + $0x60] sm:$0xff]
    %v1913 = vld [vmem:[#allocation11 + $0x68] sm:$0xff]
    %v1914 = vld [vmem:[#allocation11 + $0x70] sm:$0xff]
    %v1915 = vld [vmem:[#allocation11 + $0x78] sm:$0xff]
    %v1916 = vld [vmem:[%s6] sm:$0x1]
    %v1918 = vlaneseq
    %v1919 = vshrl.u32 %v1918, 7
    %v1920 = vsub.s32 0, %v1919
    %v1921 = vrot.slane %v1916, %v1920
    %1923 = vmatprep.subr.mxu0 0.0
    %1924 = vmatpush1.msra.mxu0 %v1900
    %1925 = vmatprep.subr.mxu0 0.0
    %1926 = vmatpush1.msra.mxu0 %v1901
    %1927 = vmatprep.subr.mxu0 0.0
    %1928 = vmatpush1.msra.mxu0 %v1902
    %1929 = vmatprep.subr.mxu0 0.0
    %1930 = vmatpush1.msra.mxu0 %v1903
    %1931 = vmatprep.subr.mxu0 0.0
    %1932 = vmatpush1.msra.mxu0 %v1904
    %1933 = vmatprep.subr.mxu0 0.0
    %1934 = vmatpush1.msra.mxu0 %v1905
    %1935 = vmatprep.subr.mxu0 0.0
    %1936 = vmatpush1.msra.mxu0 %v1906
    %1937 = vmatprep.subr.mxu0 0.0
    %1938 = vmatpush1.msra.mxu0 %v1907
    %1939 = vmatprep.subr.mxu0 0.0
    %1940 = vmatpush1.msra.mxu0 %v1908
    %1941 = vmatprep.subr.mxu0 0.0
    %1942 = vmatpush1.msra.mxu0 %v1909
    %1943 = vmatprep.subr.mxu0 0.0
    %1944 = vmatpush1.msra.mxu0 %v1910
    %1945 = vmatprep.subr.mxu0 0.0
    %1946 = vmatpush1.msra.mxu0 %v1911
    %1947 = vmatprep.subr.mxu0 0.0
    %1948 = vmatpush1.msra.mxu0 %v1912
    %1949 = vmatprep.subr.mxu0 0.0
    %1950 = vmatpush1.msra.mxu0 %v1913
    %1951 = vmatprep.subr.mxu0 0.0
    %1952 = vmatpush1.msra.mxu0 %v1914
    %1953 = vmatprep.subr.mxu0 0.0
    %1954 = vmatpush1.msra.mxu0 %v1915
    %1955 = vmatprep.subr.mxu0 0.0
    %1956 = vmatpush1.msra.mxu0 0.0
    %1957 = vmatprep.subr.mxu0 0.0
    %1958 = vmatpush1.msra.mxu0 0.0
    %1959 = vmatprep.subr.mxu0 0.0
    %1960 = vmatpush1.msra.mxu0 0.0
    %1961 = vmatprep.subr.mxu0 0.0
    %1962 = vmatpush1.msra.mxu0 0.0
    %1963 = vmatprep.subr.mxu0 0.0
    %1964 = vmatpush1.msra.mxu0 0.0
    %1965 = vmatprep.subr.mxu0 0.0
    %1966 = vmatpush1.msra.mxu0 0.0
    %1967 = vmatprep.subr.mxu0 0.0
    %1968 = vmatpush1.msra.mxu0 0.0
    %1969 = vmatprep.subr.mxu0 0.0
    %1970 = vmatpush1.msra.mxu0 0.0
    %1971 = vmatprep.subr.mxu0 0.0
    %1972 = vmatpush1.msra.mxu0 0.0
    %1973 = vmatprep.subr.mxu0 0.0
    %1974 = vmatpush1.msra.mxu0 0.0
    %1975 = vmatprep.subr.mxu0 0.0
    %1976 = vmatpush1.msra.mxu0 0.0
    %1977 = vmatprep.subr.mxu0 0.0
    %1978 = vmatpush1.msra.mxu0 0.0
    %1979 = vmatprep.subr.mxu0 0.0
    %1980 = vmatpush1.msra.mxu0 0.0
    %1981 = vmatprep.subr.mxu0 0.0
    %1982 = vmatpush1.msra.mxu0 0.0
    %1983 = vmatprep.subr.mxu0 0.0
    %1984 = vmatpush1.msra.mxu0 0.0
    %1985 = vmatprep.subr.mxu0 0.0
    %1986 = vmatpush1.msra.mxu0 0.0
    %1987 = vmatprep.mubr.f32.mxu0 0.0
    %1988 = vmatmul.mubr.f32.gmra.mrb[0].mxu0 %v1899
    %v1989 = vpop.f32.mrb[0].mxu0
    %v1990 = vadd.f32 %v1921, %v1989
    %v1991 = vpop.f32.mrb[0].mxu0
    %1992 = vdwg.mxu0
    %1993 = vst [vmem:[#allocation13] sm:$0xff] %v1990
    // Predicated region
    $region42: #{tpu_custom_call.1} parent=1 // pred_check
      _
    $region43: #{tpu_custom_call.1} parent=1 // pred_check_branch
      %1995 = sbr.rel (0) target = $region45
    $region44: #{tpu_custom_call.1} parent=1 // pred_region
      %s1997 = ssub.s32 128, 128
      %1998 = vsyncadd [#allocation7], %s1997
      %s2000 = sshll.u32 [#allocation13], 4
      %s2001 = int_to_ptr.vmem [resolvable:$true] %s2000
      %2003 = dma.vmem_to_hbm [thread:$0]  %s2001, 128, %s7, [#allocation7]
    $region45: #{tpu_custom_call.1} parent=1 // pred_fallthru
      _
    // Predicated region
    $region46: #{tpu_custom_call.1} parent=1 // pred_check
      _
    $region47: #{tpu_custom_call.1} parent=1 // pred_check_branch
      %2005 = sbr.rel (0) target = $region49
    $region48: #{tpu_custom_call.1} parent=1 // pred_region
      %2006 = dma.done [#allocation7], 128
    $region49: #{tpu_custom_call.1} parent=1 // pred_fallthru
      _
    %2007 = vsyncpa [#allocation6], 1
    %2008 = vsyncpa [#allocation9], 1
    %2009 = vsyncpa [#allocation12], 1
    %2010 = vsyncpa [#allocation7], 1

</llo_original>
